<compile_context>
chip_gen: v6e
topology: v6e:2x2x1
jax: 0.10.0
libtpu: 0.0.40
codegen_flags: <defaults>
</compile_context>

<pallas_src>
import jax
import jax.numpy as jnp
from jax import lax
from jax.experimental import pallas as pl
from jax.experimental.pallas import tpu as pltpu


def _round_up(n, m):
    return ((n + m - 1) // m) * m


# Large-negative init for the running max: identical to -inf for any sample
# with length >= 1 (LSTM outputs are in (-1, 1)), but guards zero-length /
# batch-padding rows from producing NaN/Inf in the MLP head.  Padded rows
# still produce (finite) garbage and must never be consumed (sliced off).
_NEG_BIG = -1e4


def _lstm3seg_kernel(x_ref, len_ref, wx_ref, wh_ref, b_ref,
                     w1_ref, b1_ref, w2_ref, b2_ref, out_ref):
    T, B, D = x_ref.shape             # time-major (T, batch_tile, D)
    H2, G = wh_ref.shape              # 2H, 8H (= 128 lanes when H = 16)
    H = H2 // 2

    # ---- loop-invariant loads, hoisted out of the recurrence ----------------
    lengths = len_ref[...]                               # (B, 1) int32
    wx = wx_ref[...]                                     # (D, 8H) dense
    wh = wh_ref[...]                                     # (2H, 8H) block-diag
    bias = b_ref[...]                                    # (1, 8H) f32
    cd = wh.dtype                                        # MXU operand dtype

    # Input projections for ALL timesteps, BOTH directions, in one dense MXU
    # matmul (no zero columns, no host-side x duplication):
    #   xg[t, :, fwd cols] = x(t) @ Wih_f      (needed at step t)
    #   xg[t, :, bwd cols] = x(t) @ Wih_b      (needed at step T-1-t)
    x_all = x_ref[...].reshape(T * B, D)
    xg = (jnp.dot(x_all, wx, preferred_element_type=jnp.float32)
          + bias).reshape(T, B, G)                       # f32

    # ---- one-time constants (hoisted out of the unrolled recurrence) --------
    # Gate-column layout: 4 blocks of 2H = [fwd H | bwd H], gate order i,f,o,g.
    col8 = lax.broadcasted_iota(jnp.int32, (1, G), 1)
    is_fwd8 = jnp.logical_and(col8 >= 0, col8 < H)       # fwd columns of block 0
    for k in range(1, 4):
        lo = k * H2
        is_fwd8 = jnp.logical_or(
            is_fwd8, jnp.logical_and(col8 >= lo, col8 < lo + H))
    col2 = lax.broadcasted_iota(jnp.int32, (1, H2), 1)
    is_fwd2 = col2 < H                                   # (1, 2H): h_f vs h_b cols
    # sigmoid(x) = 0.5*tanh(0.5*x) + 0.5  -> scale sigmoid-gate columns by 0.5
    # so the whole 8H gate vector needs a single full-width tanh per row group.
    gate_scale = jnp.where(col8 < 3 * H2, 0.5, 1.0).astype(jnp.float32)
    neg_inf = jnp.full((B, H2), -jnp.inf, jnp.float32)

    h = jnp.zeros((B, H2), jnp.float32)                  # [h_f | h_b]
    c = jnp.zeros((B, H2), jnp.float32)                  # [c_f | c_b]
    m = jnp.full((B, H2), _NEG_BIG, jnp.float32)         # running max

    # Static unroll: T is a compile-time constant, so every xg[i] / xg[T-1-i]
    # slice is static and the LLO scheduler can pipeline across timesteps.
    # TODO(synk): for production T, stream x in T-chunks (grid axis marked
    # 'arbitrary' with h/c/m carried in VMEM scratch, or pltpu.emit_pipeline)
    # and switch to lax.fori_loop(..., unroll=4..8) to bound code size.
    for i in range(T):
        # fwd columns take x(i)'s projection, bwd columns take x(T-1-i)'s.
        gx = jnp.where(is_fwd8, xg[i], xg[T - 1 - i])                  # (B, 8H)
        # One lane-dense recurrent matmul per step for BOTH directions.
        # TODO(synk): pin wh in the MXU weight registers across the unrolled
        # loop (pltpu.matmul_push_rhs once + matmul_acc_lhs per step) if the
        # bundle dump shows a per-step RHS re-push.
        gates = gx + jnp.dot(h.astype(cd), wh,
                             preferred_element_type=jnp.float32)       # (B, 8H)
        t_all = jnp.tanh(gates * gate_scale)     # one full-width EUP op
        s_all = 0.5 * t_all + 0.5                # sigmoid of the i/f/o columns
        i_g = s_all[:, 0 * H2:1 * H2]
        f_g = s_all[:, 1 * H2:2 * H2]
        o_g = s_all[:, 2 * H2:3 * H2]
        g_g = t_all[:, 3 * H2:4 * H2]
        c_new = f_g * c + i_g * g_g
        h_new = o_g * jnp.tanh(c_new)

        # packed-sequence semantics: forward half valid while i < len,
        # backward half valid while (T-1-i) < len.  One (B, 2H) mask per step,
        # shared by the h/c freeze and the running-max update.
        t_col = jnp.where(is_fwd2, jnp.int32(i), jnp.int32(T - 1 - i))  # (1,2H)
        valid = lengths > t_col                                         # (B,2H)
        h = jnp.where(valid, h_new, h)
        c = jnp.where(valid, c_new, c)
        m = jnp.maximum(m, jnp.where(valid, h_new, neg_inf))

    # ---- MLP head: Linear(2H -> M) -> ReLU -> Linear(M -> 3), lane-padded ---
    hidden = jnp.maximum(
        jnp.dot(m, w1_ref[...], preferred_element_type=jnp.float32) + b1_ref[...],
        0.0)
    out_ref[...] = (jnp.dot(hidden, w2_ref[...],
                            preferred_element_type=jnp.float32) + b2_ref[...])


def lstm3seg_pallas(emb_btd, lengths, kp, *, compute_dtype=jnp.float32,
                    batch_tile=128):
    """emb_btd: (B, T, D) f32 token embeddings; lengths: (B,) int32.

    batch_tile defaults to 128 so the serial recurrence latency and per-grid-
    step pipeline overhead are amortized over many rows; it is clamped down
    (to a multiple of 16, bf16-tiling safe) for tiny batches.  On v7x pick
    batch_tile <= padded_B/2 so both TensorCores get a tile.
    bf16 compute_dtype is a fast path on ALL generations (v5e's MXU is
    bf16-native); state and elementwise gate math stay f32 regardless.
    """
    B, T, D = emb_btd.shape
    batch_tile = min(batch_tile, _round_up(B, 16))
    assert batch_tile % 16 == 0
    Bp = _round_up(B, batch_tile)
    nb = Bp // batch_tile

    # Layout plumbing (one-time, host/XLA side): time-major x, batch padded to
    # a tile multiple.  No feature duplication: (T, Bp, D) is DMA'd once.
    x = jnp.transpose(emb_btd, (1, 0, 2)).astype(compute_dtype)   # (T, B, D)
    x = jnp.pad(x, ((0, 0), (0, Bp - B), (0, 0)))
    len_p = jnp.pad(lengths.astype(jnp.int32), (0, Bp - B)).reshape(Bp, 1)

    # bf16 (if requested) only on the MXU operands; biases/head stay f32.
    wx = kp['wx'].astype(compute_dtype)
    wh = kp['wh'].astype(compute_dtype)
    weights = (wx, wh, kp['b'], kp['w1'], kp['b1'], kp['w2'], kp['b2'])
    Np = kp['w2'].shape[1]                                         # padded out width

    def full_spec(a):
        return pl.BlockSpec(a.shape, lambda i: (0,) * a.ndim)

    # TODO(synk): for production sequence lengths, stream x in T-chunks instead
    # of keeping the full (T, TB, D) block resident (v7x has 64 MiB VMEM/TC).
    out = pl.pallas_call(
        _lstm3seg_kernel,
        out_shape=jax.ShapeDtypeStruct((Bp, Np), jnp.float32),
        grid=(nb,),
        in_specs=[pl.BlockSpec((T, batch_tile, D), lambda i: (0, i, 0)),
                  pl.BlockSpec((batch_tile, 1), lambda i: (i, 0))]
                 + [full_spec(w) for w in weights],
        out_specs=pl.BlockSpec((batch_tile, Np), lambda i: (i, 0)),
        compiler_params=pltpu.CompilerParams(
            dimension_semantics=("parallel",),
            # 48 MiB: leaves headroom on v7x (64 MiB/TC), well under v5e/v6e.
            vmem_limit_bytes=48 * 1024 * 1024),
    )(x, len_p, *weights)
    return out[:B, :3]


def pack_kernel_params(raw, D, H, M):
    """Pack PyTorch-layout LSTM/MLP weights into the fused, lane-dense layout.

    Fused gate-column layout (width 8H = one 128-lane vreg when H = 16):
        [ i_f|i_b | f_f|f_b | o_f|o_b | g_f|g_b ]     (each sub-block H wide)
    Sigmoid gates (i, f, o) occupy the first 6H columns, the tanh gate (g) the
    last 2H, so the in-kernel activation is one scaled full-width tanh.
    wx is DENSE (D, 8H): fwd columns hold Wih_f, bwd columns hold Wih_b (the
    kernel selects per step which timestep's projection feeds which columns).
    wh is block-diagonal (2H, 8H): h_f rows feed fwd columns, h_b rows feed
    bwd columns.
    """
    H2 = 2 * H
    order = (0, 1, 3, 2)             # PyTorch gate order is (i, f, g, o)

    def chunks(W):                   # (4H, K) -> 4 x (K, H), PyTorch order
        return [W[k * H:(k + 1) * H].T for k in range(4)]

    gih_f, gih_b = chunks(raw['Wih_f']), chunks(raw['Wih_b'])
    ghh_f, ghh_b = chunks(raw['Whh_f']), chunks(raw['Whh_b'])
    gb_f = [raw['b_f'][k * H:(k + 1) * H] for k in range(4)]
    gb_b = [raw['b_b'][k * H:(k + 1) * H] for k in range(4)]

    zH = jnp.zeros((H, H), jnp.float32)
    wx_cols, wh_cols, b_cols = [], [], []
    for k in order:
        wx_cols += [gih_f[k], gih_b[k]]                       # dense
        wh_cols += [jnp.concatenate([ghh_f[k], zH], 0),       # block-diagonal
                    jnp.concatenate([zH, ghh_b[k]], 0)]
        b_cols += [gb_f[k], gb_b[k]]
    wx = jnp.concatenate(wx_cols, axis=1)                 # (D, 8H)
    wh = jnp.concatenate(wh_cols, axis=1)                 # (2H, 8H)
    b = jnp.concatenate(b_cols).reshape(1, 8 * H)         # (1, 8H)

    # MLP head, zero-padded to 128 lanes so all stores are unmasked.
    Mp = _round_up(M, 128)
    Np = _round_up(3, 128)
    w1 = jnp.zeros((H2, Mp), jnp.float32).at[:, :M].set(raw['W1'].T)
    b1 = jnp.zeros((1, Mp), jnp.float32).at[:, :M].set(raw['b1'])
    w2 = jnp.zeros((Mp, Np), jnp.float32).at[:M, :3].set(raw['W2'].T)
    b2 = jnp.zeros((1, Np), jnp.float32).at[:, :3].set(raw['b2'])
    return dict(wx=wx, wh=wh, b=b, w1=w1, b1=b1, w2=w2, b2=b2)


def init_params(key, vocab, D, H, M):
    ks = jax.random.split(key, 13)
    s = 0.1
    emb = jax.random.normal(ks[0], (vocab, D), jnp.float32) * s

    def lstm_dir(k1, k2, k3, k4):
        Wih = jax.random.normal(k1, (4 * H, D), jnp.float32) * s
        Whh = jax.random.normal(k2, (4 * H, H), jnp.float32) * s
        bih = jax.random.normal(k3, (4 * H,), jnp.float32) * s
        bhh = jax.random.normal(k4, (4 * H,), jnp.float32) * s
        return Wih, Whh, bih + bhh

    Wih_f, Whh_f, b_f = lstm_dir(ks[1], ks[2], ks[3], ks[4])
    Wih_b, Whh_b, b_b = lstm_dir(ks[5], ks[6], ks[7], ks[8])

    W1 = jax.random.normal(ks[9], (M, 2 * H), jnp.float32) * s   # linear_bottom
    b1 = jax.random.normal(ks[10], (M,), jnp.float32) * s
    W2 = jax.random.normal(ks[11], (3, M), jnp.float32) * s      # linear_top
    b2 = jax.random.normal(ks[12], (3,), jnp.float32) * s

    raw = dict(emb=emb, Wih_f=Wih_f, Whh_f=Whh_f, b_f=b_f,
               Wih_b=Wih_b, Whh_b=Whh_b, b_b=b_b,
               W1=W1, b1=b1, W2=W2, b2=b2)
    return raw, pack_kernel_params(raw, D, H, M)


def reference_forward(token_ids, lengths_b1, raw):
    """Pure-JAX reference matching the PyTorch forward exactly."""
    x = raw['emb'][token_ids]                                 # (B, T, D)
    B, T, _ = x.shape
    H = raw['Whh_f'].shape[1]

    def direction(Wih, Whh, b, reverse):
        h = jnp.zeros((B, H), jnp.float32)
        c = jnp.zeros((B, H), jnp.float32)
        outs = [None] * T
        order = range(T - 1, -1, -1) if reverse else range(T)
        for t in order:
            g = x[:, t, :] @ Wih.T + h @ Whh.T + b
            i = jax.nn.sigmoid(g[:, :H])
            f = jax.nn.sigmoid(g[:, H:2 * H])
            gg = jnp.tanh(g[:, 2 * H:3 * H])
            o = jax.nn.sigmoid(g[:, 3 * H:])
            c_new = f * c + i * gg
            h_new = o * jnp.tanh(c_new)
            mask = lengths_b1 > t
            h = jnp.where(mask, h_new, h)
            c = jnp.where(mask, c_new, c)
            outs[t] = h_new
        return jnp.stack(outs, axis=1)                        # (B, T, H)

    out_f = direction(raw['Wih_f'], raw['Whh_f'], raw['b_f'], False)
    out_b = direction(raw['Wih_b'], raw['Whh_b'], raw['b_b'], True)
    lstm_out = jnp.concatenate([out_f, out_b], axis=-1)       # (B, T, 2H)
    tmask = (jnp.arange(T)[None, :] < lengths_b1)[:, :, None]
    pooled = jnp.max(jnp.where(tmask, lstm_out, -jnp.inf), axis=1)
    hidden = jnp.maximum(pooled @ raw['W1'].T + raw['b1'], 0.0)
    return hidden @ raw['W2'].T + raw['b2']


if __name__ == "__main__":
    B, T, D, H, M, V = 4, 8, 16, 16, 16, 50   # batch, seq, embd, hidden, mlp_hidden, vocab
    key = jax.random.PRNGKey(0)
    k_ids, k_param = jax.random.split(key)

    lengths = jnp.array([8, 5, 3, 1], dtype=jnp.int32)        # variable-length batch
    token_ids = jax.random.randint(k_ids, (B, T), 0, V, dtype=jnp.int32)
    valid = jnp.arange(T)[None, :] < lengths[:, None]
    token_ids = jnp.where(valid, token_ids, 0)                # PAD id = 0, like pad_sequence

    raw, kp = init_params(k_param, V, D, H, M)

    # Embedding lookup (glue outside the kernel, like nn.Embedding).
    emb = raw['emb'][token_ids].astype(jnp.float32)           # (B, T, D)
    ref = reference_forward(token_ids, lengths[:, None], raw)

    # f32 path: matches the reference to tight tolerance.
    out = jax.block_until_ready(
        lstm3seg_pallas(emb, lengths, kp, compute_dtype=jnp.float32))
    assert out.shape == (B, 3)
    assert jnp.allclose(out, ref, atol=5e-4, rtol=5e-4), (out, ref)

    # bf16 MXU-operand path (fast path on v5e/v6e/v7x; state/head stay f32).
    out_bf16 = jax.block_until_ready(
        lstm3seg_pallas(emb, lengths, kp, compute_dtype=jnp.bfloat16))
    assert out_bf16.shape == (B, 3)
    assert jnp.allclose(out_bf16, ref, atol=1e-1, rtol=1e-1), (out_bf16, ref)

    print("KERNEL_OK")
</pallas_src>

<mosaic_0001>
module attributes {stable_mosaic.version = 11 : i64} {
  func.func @_lstm3seg_kernel(%arg0: i32, %arg1: memref<8x16x16xf32, #tpu.memory_space<vmem>>, %arg2: memref<16x1xi32, #tpu.memory_space<vmem>>, %arg3: memref<16x128xf32, #tpu.memory_space<vmem>>, %arg4: memref<32x128xf32, #tpu.memory_space<vmem>>, %arg5: memref<1x128xf32, #tpu.memory_space<vmem>>, %arg6: memref<32x128xf32, #tpu.memory_space<vmem>>, %arg7: memref<1x128xf32, #tpu.memory_space<vmem>>, %arg8: memref<128x128xf32, #tpu.memory_space<vmem>>, %arg9: memref<1x128xf32, #tpu.memory_space<vmem>>, %arg10: memref<16x128xf32, #tpu.memory_space<vmem>>) attributes {dimension_semantics = [#tpu.dimension_semantics<parallel>], iteration_bounds = array<i64: 1>, scalar_prefetch = 0 : i64, scratch_operands = 0 : i64, tpu.core_type = #tpu.core_type<tc>, window_params = [{transform_indices = @transform_0, window_bounds = array<i64: 8, 16, 16>}, {transform_indices = @transform_1, window_bounds = array<i64: 16, 1>}, {pipeline_mode = #tpu.pipeline_mode<synchronous>, transform_indices = @transform_2, window_bounds = array<i64: 16, 128>}, {pipeline_mode = #tpu.pipeline_mode<synchronous>, transform_indices = @transform_3, window_bounds = array<i64: 32, 128>}, {pipeline_mode = #tpu.pipeline_mode<synchronous>, transform_indices = @transform_4, window_bounds = array<i64: 1, 128>}, {pipeline_mode = #tpu.pipeline_mode<synchronous>, transform_indices = @transform_5, window_bounds = array<i64: 32, 128>}, {pipeline_mode = #tpu.pipeline_mode<synchronous>, transform_indices = @transform_6, window_bounds = array<i64: 1, 128>}, {pipeline_mode = #tpu.pipeline_mode<synchronous>, transform_indices = @transform_7, window_bounds = array<i64: 128, 128>}, {pipeline_mode = #tpu.pipeline_mode<synchronous>, transform_indices = @transform_8, window_bounds = array<i64: 1, 128>}, {transform_indices = @transform_9, window_bounds = array<i64: 16, 128>}]} {
    %c0 = arith.constant 0 : index
    %c0_0 = arith.constant 0 : index
    %0 = vector.load %arg2[%c0, %c0_0] : memref<16x1xi32, #tpu.memory_space<vmem>>, vector<16x1xi32>
    %c0_1 = arith.constant 0 : index
    %c0_2 = arith.constant 0 : index
    %1 = vector.load %arg3[%c0_1, %c0_2] : memref<16x128xf32, #tpu.memory_space<vmem>>, vector<16x128xf32>
    %c0_3 = arith.constant 0 : index
    %c0_4 = arith.constant 0 : index
    %2 = vector.load %arg4[%c0_3, %c0_4] : memref<32x128xf32, #tpu.memory_space<vmem>>, vector<32x128xf32>
    %c0_5 = arith.constant 0 : index
    %c0_6 = arith.constant 0 : index
    %3 = vector.load %arg5[%c0_5, %c0_6] : memref<1x128xf32, #tpu.memory_space<vmem>>, vector<1x128xf32>
    %c0_7 = arith.constant 0 : index
    %c0_8 = arith.constant 0 : index
    %c0_9 = arith.constant 0 : index
    %4 = vector.load %arg1[%c0_7, %c0_8, %c0_9] : memref<8x16x16xf32, #tpu.memory_space<vmem>>, vector<8x16x16xf32>
    %5 = vector.shape_cast %4 : vector<8x16x16xf32> to vector<128x16xf32>
    %cst = arith.constant dense<0.000000e+00> : vector<128x128xf32>
    %6 = tpu.matmul %5, %1, %cst {dimension_numbers = #tpu.dot_dimension_numbers<[1], [0], [0], [1], [0, 0, 1, 1], [], []>} : vector<128x16xf32>, vector<16x128xf32>, vector<128x128xf32> -> vector<128x128xf32>
    %7 = vector.broadcast %3 : vector<1x128xf32> to vector<128x128xf32>
    %8 = arith.addf %6, %7 : vector<128x128xf32>
    %9 = vector.shape_cast %8 : vector<128x128xf32> to vector<8x16x128xf32>
    %10 = tpu.iota {dimensions = array<i32: 1>} : vector<1x128xi32>
    %c0_i32 = arith.constant 0 : i32
    %11 = vector.broadcast %c0_i32 : i32 to vector<1x128xi32>
    %12 = arith.cmpi sge, %10, %11 : vector<1x128xi32>
    %c16_i32 = arith.constant 16 : i32
    %13 = vector.broadcast %c16_i32 : i32 to vector<1x128xi32>
    %14 = arith.cmpi slt, %10, %13 : vector<1x128xi32>
    %15 = arith.andi %12, %14 : vector<1x128xi1>
    %c32_i32 = arith.constant 32 : i32
    %16 = vector.broadcast %c32_i32 : i32 to vector<1x128xi32>
    %17 = arith.cmpi sge, %10, %16 : vector<1x128xi32>
    %c48_i32 = arith.constant 48 : i32
    %18 = vector.broadcast %c48_i32 : i32 to vector<1x128xi32>
    %19 = arith.cmpi slt, %10, %18 : vector<1x128xi32>
    %20 = arith.andi %17, %19 : vector<1x128xi1>
    %21 = arith.ori %15, %20 : vector<1x128xi1>
    %c64_i32 = arith.constant 64 : i32
    %22 = vector.broadcast %c64_i32 : i32 to vector<1x128xi32>
    %23 = arith.cmpi sge, %10, %22 : vector<1x128xi32>
    %c80_i32 = arith.constant 80 : i32
    %24 = vector.broadcast %c80_i32 : i32 to vector<1x128xi32>
    %25 = arith.cmpi slt, %10, %24 : vector<1x128xi32>
    %26 = arith.andi %23, %25 : vector<1x128xi1>
    %27 = arith.ori %21, %26 : vector<1x128xi1>
    %c96_i32 = arith.constant 96 : i32
    %28 = vector.broadcast %c96_i32 : i32 to vector<1x128xi32>
    %29 = arith.cmpi sge, %10, %28 : vector<1x128xi32>
    %c112_i32 = arith.constant 112 : i32
    %30 = vector.broadcast %c112_i32 : i32 to vector<1x128xi32>
    %31 = arith.cmpi slt, %10, %30 : vector<1x128xi32>
    %32 = arith.andi %29, %31 : vector<1x128xi1>
    %33 = arith.ori %27, %32 : vector<1x128xi1>
    %34 = tpu.iota {dimensions = array<i32: 1>} : vector<1x32xi32>
    %c16_i32_10 = arith.constant 16 : i32
    %35 = vector.broadcast %c16_i32_10 : i32 to vector<1x32xi32>
    %36 = arith.cmpi slt, %34, %35 : vector<1x32xi32>
    %c96_i32_11 = arith.constant 96 : i32
    %37 = vector.broadcast %c96_i32_11 : i32 to vector<1x128xi32>
    %38 = arith.cmpi slt, %10, %37 : vector<1x128xi32>
    %cst_12 = arith.constant 5.000000e-01 : f32
    %cst_13 = arith.constant 1.000000e+00 : f32
    %39 = vector.broadcast %cst_12 : f32 to vector<1x128xf32>
    %40 = vector.broadcast %cst_13 : f32 to vector<1x128xf32>
    %41 = arith.select %38, %39, %40 : vector<1x128xi1>, vector<1x128xf32>
    %cst_14 = arith.constant 0xFF800000 : f32
    %42 = vector.broadcast %cst_14 : f32 to vector<16x32xf32>
    %cst_15 = arith.constant 0.000000e+00 : f32
    %43 = vector.broadcast %cst_15 : f32 to vector<16x32xf32>
    %cst_16 = arith.constant 0.000000e+00 : f32
    %44 = vector.broadcast %cst_16 : f32 to vector<16x32xf32>
    %cst_17 = arith.constant -1.000000e+04 : f32
    %45 = vector.broadcast %cst_17 : f32 to vector<16x32xf32>
    %46 = vector.extract_strided_slice %9 {offsets = [0, 0, 0], sizes = [1, 16, 128], strides = [1, 1, 1]} : vector<8x16x128xf32> to vector<1x16x128xf32>
    %47 = vector.shape_cast %46 : vector<1x16x128xf32> to vector<16x128xf32>
    %48 = vector.extract_strided_slice %9 {offsets = [7, 0, 0], sizes = [1, 16, 128], strides = [1, 1, 1]} : vector<8x16x128xf32> to vector<1x16x128xf32>
    %49 = vector.shape_cast %48 : vector<1x16x128xf32> to vector<16x128xf32>
    %50 = vector.shape_cast %33 : vector<1x128xi1> to vector<1x128xi1>
    %51 = vector.broadcast %50 : vector<1x128xi1> to vector<16x128xi1>
    %52 = arith.select %51, %47, %49 : vector<16x128xi1>, vector<16x128xf32>
    %cst_18 = arith.constant dense<0.000000e+00> : vector<16x128xf32>
    %53 = tpu.matmul %43, %2, %cst_18 {dimension_numbers = #tpu.dot_dimension_numbers<[1], [0], [0], [1], [0, 0, 1, 1], [], []>} : vector<16x32xf32>, vector<32x128xf32>, vector<16x128xf32> -> vector<16x128xf32>
    %54 = arith.addf %52, %53 : vector<16x128xf32>
    %55 = vector.broadcast %41 : vector<1x128xf32> to vector<16x128xf32>
    %56 = arith.mulf %54, %55 : vector<16x128xf32>
    %57 = math.tanh %56 : vector<16x128xf32>
    %cst_19 = arith.constant 5.000000e-01 : f32
    %58 = vector.broadcast %cst_19 : f32 to vector<16x128xf32>
    %59 = arith.mulf %58, %57 : vector<16x128xf32>
    %cst_20 = arith.constant 5.000000e-01 : f32
    %60 = vector.broadcast %cst_20 : f32 to vector<16x128xf32>
    %61 = arith.addf %59, %60 : vector<16x128xf32>
    %62 = vector.extract_strided_slice %61 {offsets = [0, 0], sizes = [16, 32], strides = [1, 1]} : vector<16x128xf32> to vector<16x32xf32>
    %63 = vector.extract_strided_slice %61 {offsets = [0, 32], sizes = [16, 32], strides = [1, 1]} : vector<16x128xf32> to vector<16x32xf32>
    %64 = vector.extract_strided_slice %61 {offsets = [0, 64], sizes = [16, 32], strides = [1, 1]} : vector<16x128xf32> to vector<16x32xf32>
    %65 = vector.extract_strided_slice %57 {offsets = [0, 96], sizes = [16, 32], strides = [1, 1]} : vector<16x128xf32> to vector<16x32xf32>
    %66 = arith.mulf %63, %44 : vector<16x32xf32>
    %67 = arith.mulf %62, %65 : vector<16x32xf32>
    %68 = arith.addf %66, %67 : vector<16x32xf32>
    %69 = math.tanh %68 : vector<16x32xf32>
    %70 = arith.mulf %64, %69 : vector<16x32xf32>
    %c0_i32_21 = arith.constant 0 : i32
    %c7_i32 = arith.constant 7 : i32
    %71 = vector.broadcast %c0_i32_21 : i32 to vector<1x32xi32>
    %72 = vector.broadcast %c7_i32 : i32 to vector<1x32xi32>
    %73 = arith.select %36, %71, %72 : vector<1x32xi1>, vector<1x32xi32>
    %74 = vector.broadcast %0 : vector<16x1xi32> to vector<16x32xi32>
    %75 = vector.broadcast %73 : vector<1x32xi32> to vector<16x32xi32>
    %76 = arith.cmpi sgt, %74, %75 : vector<16x32xi32>
    %77 = arith.select %76, %70, %43 : vector<16x32xi1>, vector<16x32xf32>
    %78 = arith.select %76, %68, %44 : vector<16x32xi1>, vector<16x32xf32>
    %79 = arith.select %76, %70, %42 : vector<16x32xi1>, vector<16x32xf32>
    %80 = arith.maximumf %45, %79 : vector<16x32xf32>
    %81 = vector.extract_strided_slice %9 {offsets = [1, 0, 0], sizes = [1, 16, 128], strides = [1, 1, 1]} : vector<8x16x128xf32> to vector<1x16x128xf32>
    %82 = vector.shape_cast %81 : vector<1x16x128xf32> to vector<16x128xf32>
    %83 = vector.extract_strided_slice %9 {offsets = [6, 0, 0], sizes = [1, 16, 128], strides = [1, 1, 1]} : vector<8x16x128xf32> to vector<1x16x128xf32>
    %84 = vector.shape_cast %83 : vector<1x16x128xf32> to vector<16x128xf32>
    %85 = vector.shape_cast %33 : vector<1x128xi1> to vector<1x128xi1>
    %86 = vector.broadcast %85 : vector<1x128xi1> to vector<16x128xi1>
    %87 = arith.select %86, %82, %84 : vector<16x128xi1>, vector<16x128xf32>
    %cst_22 = arith.constant dense<0.000000e+00> : vector<16x128xf32>
    %88 = tpu.matmul %77, %2, %cst_22 {dimension_numbers = #tpu.dot_dimension_numbers<[1], [0], [0], [1], [0, 0, 1, 1], [], []>} : vector<16x32xf32>, vector<32x128xf32>, vector<16x128xf32> -> vector<16x128xf32>
    %89 = arith.addf %87, %88 : vector<16x128xf32>
    %90 = vector.broadcast %41 : vector<1x128xf32> to vector<16x128xf32>
    %91 = arith.mulf %89, %90 : vector<16x128xf32>
    %92 = math.tanh %91 : vector<16x128xf32>
    %cst_23 = arith.constant 5.000000e-01 : f32
    %93 = vector.broadcast %cst_23 : f32 to vector<16x128xf32>
    %94 = arith.mulf %93, %92 : vector<16x128xf32>
    %cst_24 = arith.constant 5.000000e-01 : f32
    %95 = vector.broadcast %cst_24 : f32 to vector<16x128xf32>
    %96 = arith.addf %94, %95 : vector<16x128xf32>
    %97 = vector.extract_strided_slice %96 {offsets = [0, 0], sizes = [16, 32], strides = [1, 1]} : vector<16x128xf32> to vector<16x32xf32>
    %98 = vector.extract_strided_slice %96 {offsets = [0, 32], sizes = [16, 32], strides = [1, 1]} : vector<16x128xf32> to vector<16x32xf32>
    %99 = vector.extract_strided_slice %96 {offsets = [0, 64], sizes = [16, 32], strides = [1, 1]} : vector<16x128xf32> to vector<16x32xf32>
    %100 = vector.extract_strided_slice %92 {offsets = [0, 96], sizes = [16, 32], strides = [1, 1]} : vector<16x128xf32> to vector<16x32xf32>
    %101 = arith.mulf %98, %78 : vector<16x32xf32>
    %102 = arith.mulf %97, %100 : vector<16x32xf32>
    %103 = arith.addf %101, %102 : vector<16x32xf32>
    %104 = math.tanh %103 : vector<16x32xf32>
    %105 = arith.mulf %99, %104 : vector<16x32xf32>
    %c1_i32 = arith.constant 1 : i32
    %c6_i32 = arith.constant 6 : i32
    %106 = vector.broadcast %c1_i32 : i32 to vector<1x32xi32>
    %107 = vector.broadcast %c6_i32 : i32 to vector<1x32xi32>
    %108 = arith.select %36, %106, %107 : vector<1x32xi1>, vector<1x32xi32>
    %109 = vector.broadcast %0 : vector<16x1xi32> to vector<16x32xi32>
    %110 = vector.broadcast %108 : vector<1x32xi32> to vector<16x32xi32>
    %111 = arith.cmpi sgt, %109, %110 : vector<16x32xi32>
    %112 = arith.select %111, %105, %77 : vector<16x32xi1>, vector<16x32xf32>
    %113 = arith.select %111, %103, %78 : vector<16x32xi1>, vector<16x32xf32>
    %114 = arith.select %111, %105, %42 : vector<16x32xi1>, vector<16x32xf32>
    %115 = arith.maximumf %80, %114 : vector<16x32xf32>
    %116 = vector.extract_strided_slice %9 {offsets = [2, 0, 0], sizes = [1, 16, 128], strides = [1, 1, 1]} : vector<8x16x128xf32> to vector<1x16x128xf32>
    %117 = vector.shape_cast %116 : vector<1x16x128xf32> to vector<16x128xf32>
    %118 = vector.extract_strided_slice %9 {offsets = [5, 0, 0], sizes = [1, 16, 128], strides = [1, 1, 1]} : vector<8x16x128xf32> to vector<1x16x128xf32>
    %119 = vector.shape_cast %118 : vector<1x16x128xf32> to vector<16x128xf32>
    %120 = vector.shape_cast %33 : vector<1x128xi1> to vector<1x128xi1>
    %121 = vector.broadcast %120 : vector<1x128xi1> to vector<16x128xi1>
    %122 = arith.select %121, %117, %119 : vector<16x128xi1>, vector<16x128xf32>
    %cst_25 = arith.constant dense<0.000000e+00> : vector<16x128xf32>
    %123 = tpu.matmul %112, %2, %cst_25 {dimension_numbers = #tpu.dot_dimension_numbers<[1], [0], [0], [1], [0, 0, 1, 1], [], []>} : vector<16x32xf32>, vector<32x128xf32>, vector<16x128xf32> -> vector<16x128xf32>
    %124 = arith.addf %122, %123 : vector<16x128xf32>
    %125 = vector.broadcast %41 : vector<1x128xf32> to vector<16x128xf32>
    %126 = arith.mulf %124, %125 : vector<16x128xf32>
    %127 = math.tanh %126 : vector<16x128xf32>
    %cst_26 = arith.constant 5.000000e-01 : f32
    %128 = vector.broadcast %cst_26 : f32 to vector<16x128xf32>
    %129 = arith.mulf %128, %127 : vector<16x128xf32>
    %cst_27 = arith.constant 5.000000e-01 : f32
    %130 = vector.broadcast %cst_27 : f32 to vector<16x128xf32>
    %131 = arith.addf %129, %130 : vector<16x128xf32>
    %132 = vector.extract_strided_slice %131 {offsets = [0, 0], sizes = [16, 32], strides = [1, 1]} : vector<16x128xf32> to vector<16x32xf32>
    %133 = vector.extract_strided_slice %131 {offsets = [0, 32], sizes = [16, 32], strides = [1, 1]} : vector<16x128xf32> to vector<16x32xf32>
    %134 = vector.extract_strided_slice %131 {offsets = [0, 64], sizes = [16, 32], strides = [1, 1]} : vector<16x128xf32> to vector<16x32xf32>
    %135 = vector.extract_strided_slice %127 {offsets = [0, 96], sizes = [16, 32], strides = [1, 1]} : vector<16x128xf32> to vector<16x32xf32>
    %136 = arith.mulf %133, %113 : vector<16x32xf32>
    %137 = arith.mulf %132, %135 : vector<16x32xf32>
    %138 = arith.addf %136, %137 : vector<16x32xf32>
    %139 = math.tanh %138 : vector<16x32xf32>
    %140 = arith.mulf %134, %139 : vector<16x32xf32>
    %c2_i32 = arith.constant 2 : i32
    %c5_i32 = arith.constant 5 : i32
    %141 = vector.broadcast %c2_i32 : i32 to vector<1x32xi32>
    %142 = vector.broadcast %c5_i32 : i32 to vector<1x32xi32>
    %143 = arith.select %36, %141, %142 : vector<1x32xi1>, vector<1x32xi32>
    %144 = vector.broadcast %0 : vector<16x1xi32> to vector<16x32xi32>
    %145 = vector.broadcast %143 : vector<1x32xi32> to vector<16x32xi32>
    %146 = arith.cmpi sgt, %144, %145 : vector<16x32xi32>
    %147 = arith.select %146, %140, %112 : vector<16x32xi1>, vector<16x32xf32>
    %148 = arith.select %146, %138, %113 : vector<16x32xi1>, vector<16x32xf32>
    %149 = arith.select %146, %140, %42 : vector<16x32xi1>, vector<16x32xf32>
    %150 = arith.maximumf %115, %149 : vector<16x32xf32>
    %151 = vector.extract_strided_slice %9 {offsets = [3, 0, 0], sizes = [1, 16, 128], strides = [1, 1, 1]} : vector<8x16x128xf32> to vector<1x16x128xf32>
    %152 = vector.shape_cast %151 : vector<1x16x128xf32> to vector<16x128xf32>
    %153 = vector.extract_strided_slice %9 {offsets = [4, 0, 0], sizes = [1, 16, 128], strides = [1, 1, 1]} : vector<8x16x128xf32> to vector<1x16x128xf32>
    %154 = vector.shape_cast %153 : vector<1x16x128xf32> to vector<16x128xf32>
    %155 = vector.shape_cast %33 : vector<1x128xi1> to vector<1x128xi1>
    %156 = vector.broadcast %155 : vector<1x128xi1> to vector<16x128xi1>
    %157 = arith.select %156, %152, %154 : vector<16x128xi1>, vector<16x128xf32>
    %cst_28 = arith.constant dense<0.000000e+00> : vector<16x128xf32>
    %158 = tpu.matmul %147, %2, %cst_28 {dimension_numbers = #tpu.dot_dimension_numbers<[1], [0], [0], [1], [0, 0, 1, 1], [], []>} : vector<16x32xf32>, vector<32x128xf32>, vector<16x128xf32> -> vector<16x128xf32>
    %159 = arith.addf %157, %158 : vector<16x128xf32>
    %160 = vector.broadcast %41 : vector<1x128xf32> to vector<16x128xf32>
    %161 = arith.mulf %159, %160 : vector<16x128xf32>
    %162 = math.tanh %161 : vector<16x128xf32>
    %cst_29 = arith.constant 5.000000e-01 : f32
    %163 = vector.broadcast %cst_29 : f32 to vector<16x128xf32>
    %164 = arith.mulf %163, %162 : vector<16x128xf32>
    %cst_30 = arith.constant 5.000000e-01 : f32
    %165 = vector.broadcast %cst_30 : f32 to vector<16x128xf32>
    %166 = arith.addf %164, %165 : vector<16x128xf32>
    %167 = vector.extract_strided_slice %166 {offsets = [0, 0], sizes = [16, 32], strides = [1, 1]} : vector<16x128xf32> to vector<16x32xf32>
    %168 = vector.extract_strided_slice %166 {offsets = [0, 32], sizes = [16, 32], strides = [1, 1]} : vector<16x128xf32> to vector<16x32xf32>
    %169 = vector.extract_strided_slice %166 {offsets = [0, 64], sizes = [16, 32], strides = [1, 1]} : vector<16x128xf32> to vector<16x32xf32>
    %170 = vector.extract_strided_slice %162 {offsets = [0, 96], sizes = [16, 32], strides = [1, 1]} : vector<16x128xf32> to vector<16x32xf32>
    %171 = arith.mulf %168, %148 : vector<16x32xf32>
    %172 = arith.mulf %167, %170 : vector<16x32xf32>
    %173 = arith.addf %171, %172 : vector<16x32xf32>
    %174 = math.tanh %173 : vector<16x32xf32>
    %175 = arith.mulf %169, %174 : vector<16x32xf32>
    %c3_i32 = arith.constant 3 : i32
    %c4_i32 = arith.constant 4 : i32
    %176 = vector.broadcast %c3_i32 : i32 to vector<1x32xi32>
    %177 = vector.broadcast %c4_i32 : i32 to vector<1x32xi32>
    %178 = arith.select %36, %176, %177 : vector<1x32xi1>, vector<1x32xi32>
    %179 = vector.broadcast %0 : vector<16x1xi32> to vector<16x32xi32>
    %180 = vector.broadcast %178 : vector<1x32xi32> to vector<16x32xi32>
    %181 = arith.cmpi sgt, %179, %180 : vector<16x32xi32>
    %182 = arith.select %181, %175, %147 : vector<16x32xi1>, vector<16x32xf32>
    %183 = arith.select %181, %173, %148 : vector<16x32xi1>, vector<16x32xf32>
    %184 = arith.select %181, %175, %42 : vector<16x32xi1>, vector<16x32xf32>
    %185 = arith.maximumf %150, %184 : vector<16x32xf32>
    %186 = vector.extract_strided_slice %9 {offsets = [4, 0, 0], sizes = [1, 16, 128], strides = [1, 1, 1]} : vector<8x16x128xf32> to vector<1x16x128xf32>
    %187 = vector.shape_cast %186 : vector<1x16x128xf32> to vector<16x128xf32>
    %188 = vector.extract_strided_slice %9 {offsets = [3, 0, 0], sizes = [1, 16, 128], strides = [1, 1, 1]} : vector<8x16x128xf32> to vector<1x16x128xf32>
    %189 = vector.shape_cast %188 : vector<1x16x128xf32> to vector<16x128xf32>
    %190 = vector.shape_cast %33 : vector<1x128xi1> to vector<1x128xi1>
    %191 = vector.broadcast %190 : vector<1x128xi1> to vector<16x128xi1>
    %192 = arith.select %191, %187, %189 : vector<16x128xi1>, vector<16x128xf32>
    %cst_31 = arith.constant dense<0.000000e+00> : vector<16x128xf32>
    %193 = tpu.matmul %182, %2, %cst_31 {dimension_numbers = #tpu.dot_dimension_numbers<[1], [0], [0], [1], [0, 0, 1, 1], [], []>} : vector<16x32xf32>, vector<32x128xf32>, vector<16x128xf32> -> vector<16x128xf32>
    %194 = arith.addf %192, %193 : vector<16x128xf32>
    %195 = vector.broadcast %41 : vector<1x128xf32> to vector<16x128xf32>
    %196 = arith.mulf %194, %195 : vector<16x128xf32>
    %197 = math.tanh %196 : vector<16x128xf32>
    %cst_32 = arith.constant 5.000000e-01 : f32
    %198 = vector.broadcast %cst_32 : f32 to vector<16x128xf32>
    %199 = arith.mulf %198, %197 : vector<16x128xf32>
    %cst_33 = arith.constant 5.000000e-01 : f32
    %200 = vector.broadcast %cst_33 : f32 to vector<16x128xf32>
    %201 = arith.addf %199, %200 : vector<16x128xf32>
    %202 = vector.extract_strided_slice %201 {offsets = [0, 0], sizes = [16, 32], strides = [1, 1]} : vector<16x128xf32> to vector<16x32xf32>
    %203 = vector.extract_strided_slice %201 {offsets = [0, 32], sizes = [16, 32], strides = [1, 1]} : vector<16x128xf32> to vector<16x32xf32>
    %204 = vector.extract_strided_slice %201 {offsets = [0, 64], sizes = [16, 32], strides = [1, 1]} : vector<16x128xf32> to vector<16x32xf32>
    %205 = vector.extract_strided_slice %197 {offsets = [0, 96], sizes = [16, 32], strides = [1, 1]} : vector<16x128xf32> to vector<16x32xf32>
    %206 = arith.mulf %203, %183 : vector<16x32xf32>
    %207 = arith.mulf %202, %205 : vector<16x32xf32>
    %208 = arith.addf %206, %207 : vector<16x32xf32>
    %209 = math.tanh %208 : vector<16x32xf32>
    %210 = arith.mulf %204, %209 : vector<16x32xf32>
    %c4_i32_34 = arith.constant 4 : i32
    %c3_i32_35 = arith.constant 3 : i32
    %211 = vector.broadcast %c4_i32_34 : i32 to vector<1x32xi32>
    %212 = vector.broadcast %c3_i32_35 : i32 to vector<1x32xi32>
    %213 = arith.select %36, %211, %212 : vector<1x32xi1>, vector<1x32xi32>
    %214 = vector.broadcast %0 : vector<16x1xi32> to vector<16x32xi32>
    %215 = vector.broadcast %213 : vector<1x32xi32> to vector<16x32xi32>
    %216 = arith.cmpi sgt, %214, %215 : vector<16x32xi32>
    %217 = arith.select %216, %210, %182 : vector<16x32xi1>, vector<16x32xf32>
    %218 = arith.select %216, %208, %183 : vector<16x32xi1>, vector<16x32xf32>
    %219 = arith.select %216, %210, %42 : vector<16x32xi1>, vector<16x32xf32>
    %220 = arith.maximumf %185, %219 : vector<16x32xf32>
    %221 = vector.extract_strided_slice %9 {offsets = [5, 0, 0], sizes = [1, 16, 128], strides = [1, 1, 1]} : vector<8x16x128xf32> to vector<1x16x128xf32>
    %222 = vector.shape_cast %221 : vector<1x16x128xf32> to vector<16x128xf32>
    %223 = vector.extract_strided_slice %9 {offsets = [2, 0, 0], sizes = [1, 16, 128], strides = [1, 1, 1]} : vector<8x16x128xf32> to vector<1x16x128xf32>
    %224 = vector.shape_cast %223 : vector<1x16x128xf32> to vector<16x128xf32>
    %225 = vector.shape_cast %33 : vector<1x128xi1> to vector<1x128xi1>
    %226 = vector.broadcast %225 : vector<1x128xi1> to vector<16x128xi1>
    %227 = arith.select %226, %222, %224 : vector<16x128xi1>, vector<16x128xf32>
    %cst_36 = arith.constant dense<0.000000e+00> : vector<16x128xf32>
    %228 = tpu.matmul %217, %2, %cst_36 {dimension_numbers = #tpu.dot_dimension_numbers<[1], [0], [0], [1], [0, 0, 1, 1], [], []>} : vector<16x32xf32>, vector<32x128xf32>, vector<16x128xf32> -> vector<16x128xf32>
    %229 = arith.addf %227, %228 : vector<16x128xf32>
    %230 = vector.broadcast %41 : vector<1x128xf32> to vector<16x128xf32>
    %231 = arith.mulf %229, %230 : vector<16x128xf32>
    %232 = math.tanh %231 : vector<16x128xf32>
    %cst_37 = arith.constant 5.000000e-01 : f32
    %233 = vector.broadcast %cst_37 : f32 to vector<16x128xf32>
    %234 = arith.mulf %233, %232 : vector<16x128xf32>
    %cst_38 = arith.constant 5.000000e-01 : f32
    %235 = vector.broadcast %cst_38 : f32 to vector<16x128xf32>
    %236 = arith.addf %234, %235 : vector<16x128xf32>
    %237 = vector.extract_strided_slice %236 {offsets = [0, 0], sizes = [16, 32], strides = [1, 1]} : vector<16x128xf32> to vector<16x32xf32>
    %238 = vector.extract_strided_slice %236 {offsets = [0, 32], sizes = [16, 32], strides = [1, 1]} : vector<16x128xf32> to vector<16x32xf32>
    %239 = vector.extract_strided_slice %236 {offsets = [0, 64], sizes = [16, 32], strides = [1, 1]} : vector<16x128xf32> to vector<16x32xf32>
    %240 = vector.extract_strided_slice %232 {offsets = [0, 96], sizes = [16, 32], strides = [1, 1]} : vector<16x128xf32> to vector<16x32xf32>
    %241 = arith.mulf %238, %218 : vector<16x32xf32>
    %242 = arith.mulf %237, %240 : vector<16x32xf32>
    %243 = arith.addf %241, %242 : vector<16x32xf32>
    %244 = math.tanh %243 : vector<16x32xf32>
    %245 = arith.mulf %239, %244 : vector<16x32xf32>
    %c5_i32_39 = arith.constant 5 : i32
    %c2_i32_40 = arith.constant 2 : i32
    %246 = vector.broadcast %c5_i32_39 : i32 to vector<1x32xi32>
    %247 = vector.broadcast %c2_i32_40 : i32 to vector<1x32xi32>
    %248 = arith.select %36, %246, %247 : vector<1x32xi1>, vector<1x32xi32>
    %249 = vector.broadcast %0 : vector<16x1xi32> to vector<16x32xi32>
    %250 = vector.broadcast %248 : vector<1x32xi32> to vector<16x32xi32>
    %251 = arith.cmpi sgt, %249, %250 : vector<16x32xi32>
    %252 = arith.select %251, %245, %217 : vector<16x32xi1>, vector<16x32xf32>
    %253 = arith.select %251, %243, %218 : vector<16x32xi1>, vector<16x32xf32>
    %254 = arith.select %251, %245, %42 : vector<16x32xi1>, vector<16x32xf32>
    %255 = arith.maximumf %220, %254 : vector<16x32xf32>
    %256 = vector.extract_strided_slice %9 {offsets = [6, 0, 0], sizes = [1, 16, 128], strides = [1, 1, 1]} : vector<8x16x128xf32> to vector<1x16x128xf32>
    %257 = vector.shape_cast %256 : vector<1x16x128xf32> to vector<16x128xf32>
    %258 = vector.extract_strided_slice %9 {offsets = [1, 0, 0], sizes = [1, 16, 128], strides = [1, 1, 1]} : vector<8x16x128xf32> to vector<1x16x128xf32>
    %259 = vector.shape_cast %258 : vector<1x16x128xf32> to vector<16x128xf32>
    %260 = vector.shape_cast %33 : vector<1x128xi1> to vector<1x128xi1>
    %261 = vector.broadcast %260 : vector<1x128xi1> to vector<16x128xi1>
    %262 = arith.select %261, %257, %259 : vector<16x128xi1>, vector<16x128xf32>
    %cst_41 = arith.constant dense<0.000000e+00> : vector<16x128xf32>
    %263 = tpu.matmul %252, %2, %cst_41 {dimension_numbers = #tpu.dot_dimension_numbers<[1], [0], [0], [1], [0, 0, 1, 1], [], []>} : vector<16x32xf32>, vector<32x128xf32>, vector<16x128xf32> -> vector<16x128xf32>
    %264 = arith.addf %262, %263 : vector<16x128xf32>
    %265 = vector.broadcast %41 : vector<1x128xf32> to vector<16x128xf32>
    %266 = arith.mulf %264, %265 : vector<16x128xf32>
    %267 = math.tanh %266 : vector<16x128xf32>
    %cst_42 = arith.constant 5.000000e-01 : f32
    %268 = vector.broadcast %cst_42 : f32 to vector<16x128xf32>
    %269 = arith.mulf %268, %267 : vector<16x128xf32>
    %cst_43 = arith.constant 5.000000e-01 : f32
    %270 = vector.broadcast %cst_43 : f32 to vector<16x128xf32>
    %271 = arith.addf %269, %270 : vector<16x128xf32>
    %272 = vector.extract_strided_slice %271 {offsets = [0, 0], sizes = [16, 32], strides = [1, 1]} : vector<16x128xf32> to vector<16x32xf32>
    %273 = vector.extract_strided_slice %271 {offsets = [0, 32], sizes = [16, 32], strides = [1, 1]} : vector<16x128xf32> to vector<16x32xf32>
    %274 = vector.extract_strided_slice %271 {offsets = [0, 64], sizes = [16, 32], strides = [1, 1]} : vector<16x128xf32> to vector<16x32xf32>
    %275 = vector.extract_strided_slice %267 {offsets = [0, 96], sizes = [16, 32], strides = [1, 1]} : vector<16x128xf32> to vector<16x32xf32>
    %276 = arith.mulf %273, %253 : vector<16x32xf32>
    %277 = arith.mulf %272, %275 : vector<16x32xf32>
    %278 = arith.addf %276, %277 : vector<16x32xf32>
    %279 = math.tanh %278 : vector<16x32xf32>
    %280 = arith.mulf %274, %279 : vector<16x32xf32>
    %c6_i32_44 = arith.constant 6 : i32
    %c1_i32_45 = arith.constant 1 : i32
    %281 = vector.broadcast %c6_i32_44 : i32 to vector<1x32xi32>
    %282 = vector.broadcast %c1_i32_45 : i32 to vector<1x32xi32>
    %283 = arith.select %36, %281, %282 : vector<1x32xi1>, vector<1x32xi32>
    %284 = vector.broadcast %0 : vector<16x1xi32> to vector<16x32xi32>
    %285 = vector.broadcast %283 : vector<1x32xi32> to vector<16x32xi32>
    %286 = arith.cmpi sgt, %284, %285 : vector<16x32xi32>
    %287 = arith.select %286, %280, %252 : vector<16x32xi1>, vector<16x32xf32>
    %288 = arith.select %286, %278, %253 : vector<16x32xi1>, vector<16x32xf32>
    %289 = arith.select %286, %280, %42 : vector<16x32xi1>, vector<16x32xf32>
    %290 = arith.maximumf %255, %289 : vector<16x32xf32>
    %291 = vector.extract_strided_slice %9 {offsets = [7, 0, 0], sizes = [1, 16, 128], strides = [1, 1, 1]} : vector<8x16x128xf32> to vector<1x16x128xf32>
    %292 = vector.shape_cast %291 : vector<1x16x128xf32> to vector<16x128xf32>
    %293 = vector.extract_strided_slice %9 {offsets = [0, 0, 0], sizes = [1, 16, 128], strides = [1, 1, 1]} : vector<8x16x128xf32> to vector<1x16x128xf32>
    %294 = vector.shape_cast %293 : vector<1x16x128xf32> to vector<16x128xf32>
    %295 = vector.shape_cast %33 : vector<1x128xi1> to vector<1x128xi1>
    %296 = vector.broadcast %295 : vector<1x128xi1> to vector<16x128xi1>
    %297 = arith.select %296, %292, %294 : vector<16x128xi1>, vector<16x128xf32>
    %cst_46 = arith.constant dense<0.000000e+00> : vector<16x128xf32>
    %298 = tpu.matmul %287, %2, %cst_46 {dimension_numbers = #tpu.dot_dimension_numbers<[1], [0], [0], [1], [0, 0, 1, 1], [], []>} : vector<16x32xf32>, vector<32x128xf32>, vector<16x128xf32> -> vector<16x128xf32>
    %299 = arith.addf %297, %298 : vector<16x128xf32>
    %300 = vector.broadcast %41 : vector<1x128xf32> to vector<16x128xf32>
    %301 = arith.mulf %299, %300 : vector<16x128xf32>
    %302 = math.tanh %301 : vector<16x128xf32>
    %cst_47 = arith.constant 5.000000e-01 : f32
    %303 = vector.broadcast %cst_47 : f32 to vector<16x128xf32>
    %304 = arith.mulf %303, %302 : vector<16x128xf32>
    %cst_48 = arith.constant 5.000000e-01 : f32
    %305 = vector.broadcast %cst_48 : f32 to vector<16x128xf32>
    %306 = arith.addf %304, %305 : vector<16x128xf32>
    %307 = vector.extract_strided_slice %306 {offsets = [0, 0], sizes = [16, 32], strides = [1, 1]} : vector<16x128xf32> to vector<16x32xf32>
    %308 = vector.extract_strided_slice %306 {offsets = [0, 32], sizes = [16, 32], strides = [1, 1]} : vector<16x128xf32> to vector<16x32xf32>
    %309 = vector.extract_strided_slice %306 {offsets = [0, 64], sizes = [16, 32], strides = [1, 1]} : vector<16x128xf32> to vector<16x32xf32>
    %310 = vector.extract_strided_slice %302 {offsets = [0, 96], sizes = [16, 32], strides = [1, 1]} : vector<16x128xf32> to vector<16x32xf32>
    %311 = arith.mulf %308, %288 : vector<16x32xf32>
    %312 = arith.mulf %307, %310 : vector<16x32xf32>
    %313 = arith.addf %311, %312 : vector<16x32xf32>
    %314 = math.tanh %313 : vector<16x32xf32>
    %315 = arith.mulf %309, %314 : vector<16x32xf32>
    %c7_i32_49 = arith.constant 7 : i32
    %c0_i32_50 = arith.constant 0 : i32
    %316 = vector.broadcast %c7_i32_49 : i32 to vector<1x32xi32>
    %317 = vector.broadcast %c0_i32_50 : i32 to vector<1x32xi32>
    %318 = arith.select %36, %316, %317 : vector<1x32xi1>, vector<1x32xi32>
    %319 = vector.broadcast %0 : vector<16x1xi32> to vector<16x32xi32>
    %320 = vector.broadcast %318 : vector<1x32xi32> to vector<16x32xi32>
    %321 = arith.cmpi sgt, %319, %320 : vector<16x32xi32>
    %322 = arith.select %321, %315, %42 : vector<16x32xi1>, vector<16x32xf32>
    %323 = arith.maximumf %290, %322 : vector<16x32xf32>
    %c0_51 = arith.constant 0 : index
    %c0_52 = arith.constant 0 : index
    %324 = vector.load %arg6[%c0_51, %c0_52] : memref<32x128xf32, #tpu.memory_space<vmem>>, vector<32x128xf32>
    %cst_53 = arith.constant dense<0.000000e+00> : vector<16x128xf32>
    %325 = tpu.matmul %323, %324, %cst_53 {dimension_numbers = #tpu.dot_dimension_numbers<[1], [0], [0], [1], [0, 0, 1, 1], [], []>} : vector<16x32xf32>, vector<32x128xf32>, vector<16x128xf32> -> vector<16x128xf32>
    %c0_54 = arith.constant 0 : index
    %c0_55 = arith.constant 0 : index
    %326 = vector.load %arg7[%c0_54, %c0_55] : memref<1x128xf32, #tpu.memory_space<vmem>>, vector<1x128xf32>
    %327 = vector.broadcast %326 : vector<1x128xf32> to vector<16x128xf32>
    %328 = arith.addf %325, %327 : vector<16x128xf32>
    %cst_56 = arith.constant 0.000000e+00 : f32
    %329 = vector.broadcast %cst_56 : f32 to vector<16x128xf32>
    %330 = arith.maximumf %328, %329 : vector<16x128xf32>
    %c0_57 = arith.constant 0 : index
    %c0_58 = arith.constant 0 : index
    %331 = vector.load %arg8[%c0_57, %c0_58] : memref<128x128xf32, #tpu.memory_space<vmem>>, vector<128x128xf32>
    %cst_59 = arith.constant dense<0.000000e+00> : vector<16x128xf32>
    %332 = tpu.matmul %330, %331, %cst_59 {dimension_numbers = #tpu.dot_dimension_numbers<[1], [0], [0], [1], [0, 0, 1, 1], [], []>} : vector<16x128xf32>, vector<128x128xf32>, vector<16x128xf32> -> vector<16x128xf32>
    %c0_60 = arith.constant 0 : index
    %c0_61 = arith.constant 0 : index
    %333 = vector.load %arg9[%c0_60, %c0_61] : memref<1x128xf32, #tpu.memory_space<vmem>>, vector<1x128xf32>
    %334 = vector.broadcast %333 : vector<1x128xf32> to vector<16x128xf32>
    %335 = arith.addf %332, %334 : vector<16x128xf32>
    %c0_62 = arith.constant 0 : index
    %c0_63 = arith.constant 0 : index
    %336 = vector.load %arg10[%c0_62, %c0_63] : memref<16x128xf32, #tpu.memory_space<vmem>>, vector<16x128xf32>
    tpu.vector_store %arg10[%c0_62, %c0_63], %335 {strides = array<i32>} : memref<16x128xf32, #tpu.memory_space<vmem>>, vector<16x128xf32>,
    return
  }
  func.func @transform_0(%arg0: i32) -> (i32, i32, i32) {
    %c0_i32 = arith.constant 0 : i32
    %c0_i32_0 = arith.constant 0 : i32
    %c0_i32_1 = arith.constant 0 : i32
    return %c0_i32, %arg0, %c0_i32_0 : i32, i32, i32
  }
  func.func @transform_1(%arg0: i32) -> (i32, i32) {
    %c0_i32 = arith.constant 0 : i32
    %c0_i32_0 = arith.constant 0 : i32
    return %arg0, %c0_i32 : i32, i32
  }
  func.func @transform_2(%arg0: i32) -> (i32, i32) {
    %c0_i32 = arith.constant 0 : i32
    %c0_i32_0 = arith.constant 0 : i32
    %c0_i32_1 = arith.constant 0 : i32
    return %c0_i32, %c0_i32_0 : i32, i32
  }
  func.func @transform_3(%arg0: i32) -> (i32, i32) {
    %c0_i32 = arith.constant 0 : i32
    %c0_i32_0 = arith.constant 0 : i32
    %c0_i32_1 = arith.constant 0 : i32
    return %c0_i32, %c0_i32_0 : i32, i32
  }
  func.func @transform_4(%arg0: i32) -> (i32, i32) {
    %c0_i32 = arith.constant 0 : i32
    %c0_i32_0 = arith.constant 0 : i32
    %c0_i32_1 = arith.constant 0 : i32
    return %c0_i32, %c0_i32_0 : i32, i32
  }
  func.func @transform_5(%arg0: i32) -> (i32, i32) {
    %c0_i32 = arith.constant 0 : i32
    %c0_i32_0 = arith.constant 0 : i32
    %c0_i32_1 = arith.constant 0 : i32
    return %c0_i32, %c0_i32_0 : i32, i32
  }
  func.func @transform_6(%arg0: i32) -> (i32, i32) {
    %c0_i32 = arith.constant 0 : i32
    %c0_i32_0 = arith.constant 0 : i32
    %c0_i32_1 = arith.constant 0 : i32
    return %c0_i32, %c0_i32_0 : i32, i32
  }
  func.func @transform_7(%arg0: i32) -> (i32, i32) {
    %c0_i32 = arith.constant 0 : i32
    %c0_i32_0 = arith.constant 0 : i32
    %c0_i32_1 = arith.constant 0 : i32
    return %c0_i32, %c0_i32_0 : i32, i32
  }
  func.func @transform_8(%arg0: i32) -> (i32, i32) {
    %c0_i32 = arith.constant 0 : i32
    %c0_i32_0 = arith.constant 0 : i32
    %c0_i32_1 = arith.constant 0 : i32
    return %c0_i32, %c0_i32_0 : i32, i32
  }
  func.func @transform_9(%arg0: i32) -> (i32, i32) {
    %c0_i32 = arith.constant 0 : i32
    %c0_i32_0 = arith.constant 0 : i32
    return %arg0, %c0_i32 : i32, i32
  }
}

</mosaic_0001>

<llo_original>
// kernel: tpu_custom_call.1
$region0: #{tpu_custom_call.1}
  #allocation0 [shape = 'u32[]', space=smem, size = 0x4, offset = 0x4, fixed_abs, tag = 'smem constant byte address 0x4 - core index']
  #allocation1 [shape = 'u32[144,128]{1,0:T(1,128)}', space=vmem, size = 0x12000, scoped, tag = 'internal scratch']
  %s0 = inlined_call_operand.hbm [shape: f32[8,16,16], index: 0, kind: input, shape index: {}]
  %s1 = inlined_call_operand.vmem [shape: s32[16,1], index: 1, kind: input, shape index: {}]
  %s2 = inlined_call_operand.vmem [shape: f32[16,128], index: 2, kind: input, shape index: {}]
  %s3 = inlined_call_operand.hbm [shape: f32[32,128], index: 3, kind: input, shape index: {}]
  %s4 = inlined_call_operand.vmem [shape: f32[1,128], index: 4, kind: input, shape index: {}]
  %s5 = inlined_call_operand.hbm [shape: f32[32,128], index: 5, kind: input, shape index: {}]
  %s6 = inlined_call_operand.vmem [shape: f32[1,128], index: 6, kind: input, shape index: {}]
  %s7 = inlined_call_operand.hbm [shape: f32[128,128], index: 7, kind: input, shape index: {}]
  %s8 = inlined_call_operand.vmem [shape: f32[1,128], index: 8, kind: input, shape index: {}]
  %s9 = inlined_call_operand.hbm [shape: f32[16,128], index: 9, kind: output, shape index: {}]
  %s10 = sld [smem:[#allocation0]]
  $region62: #{tpu_custom_call.1} parent=0
    _
  %s12 = ssub.s32 1, %s10
  %s13 = scalar_select 0, %s12, %s10
  $region1: #{tpu_custom_call.1} parent=0
    #allocation2 [shape = 'u8[65536]{0}', space=vmem, size = 0x10000, scoped, tag = 'input window, operand 0, single buffered']
    #allocation3 [shape = 's32[1]{0}', space=sflag, size = 0x4, scoped, tag = 'scoped memory for tpu_custom_call.1']
    #allocation4 [shape = 's32[1]{0}', space=sflag, size = 0x4, scoped, tag = 'scoped memory for tpu_custom_call.1']
    #allocation5 [shape = 'u8[16384]{0}', space=vmem, size = 0x4000, scoped, tag = 'input window, operand 3, single buffered']
    #allocation6 [shape = 's32[1]{0}', space=sflag, size = 0x4, scoped, tag = 'scoped memory for tpu_custom_call.1']
    #allocation7 [shape = 'u8[16384]{0}', space=vmem, size = 0x4000, scoped, tag = 'input window, operand 5, single buffered']
    #allocation8 [shape = 'u8[65536]{0}', space=vmem, size = 0x10000, scoped, tag = 'input window, operand 7, single buffered']
    #allocation9 [shape = 's32[1]{0}', space=sflag, size = 0x4, scoped, tag = 'scoped memory for tpu_custom_call.1']
    #allocation10 [shape = 'u8[8192]{0}', space=vmem, size = 0x2000, scoped, tag = 'output window, operand 0, single buffered']
    %14 = vsyncpa [#allocation3], 0
    %15 = vsyncpa [#allocation6], 0
    %16 = vsyncpa [#allocation9], 0
    %17 = vsyncpa [#allocation4], 0
    // Predicated region
    $region2: #{tpu_custom_call.1} parent=1 // pred_check
      _
    $region3: #{tpu_custom_call.1} parent=1 // pred_check_branch
      %19 = sbr.rel (0) target = $region5
    $region4: #{tpu_custom_call.1} parent=1 // pred_region
      %s21 = ssub.s32 2048, 2048
      %22 = vsyncadd [#allocation3], %s21
      %s23 = sshll.u32 [#allocation2], 4
      %s24 = int_to_ptr.vmem [resolvable:$true] %s23
      %29 = dma.hbm_to_vmem [thread:$0]  %s0, 2048, %s24, [#allocation3], 128, 128, 8
    $region5: #{tpu_custom_call.1} parent=1 // pred_fallthru
      _
    // Predicated region
    $region6: #{tpu_custom_call.1} parent=1 // pred_check
      _
    $region7: #{tpu_custom_call.1} parent=1 // pred_check_branch
      %31 = sbr.rel (0) target = $region9
    $region8: #{tpu_custom_call.1} parent=1 // pred_region
      _
    $region9: #{tpu_custom_call.1} parent=1 // pred_fallthru
      _
    // Predicated region
    $region10: #{tpu_custom_call.1} parent=1 // pred_check
      _
    $region11: #{tpu_custom_call.1} parent=1 // pred_check_branch
      %33 = sbr.rel (0) target = $region13
    $region12: #{tpu_custom_call.1} parent=1 // pred_region
      _
    $region13: #{tpu_custom_call.1} parent=1 // pred_fallthru
      _
    // Predicated region
    $region14: #{tpu_custom_call.1} parent=1 // pred_check
      _
    $region15: #{tpu_custom_call.1} parent=1 // pred_check_branch
      %35 = sbr.rel (0) target = $region17
    $region16: #{tpu_custom_call.1} parent=1 // pred_region
      %s37 = ssub.s32 512, 512
      %38 = vsyncadd [#allocation6], %s37
      %s39 = sshll.u32 [#allocation5], 4
      %s40 = int_to_ptr.vmem [resolvable:$true] %s39
      %45 = dma.hbm_to_vmem [thread:$0]  %s3, 512, %s40, [#allocation6], 128, 128, 8
    $region17: #{tpu_custom_call.1} parent=1 // pred_fallthru
      _
    // Predicated region
    $region18: #{tpu_custom_call.1} parent=1 // pred_check
      _
    $region19: #{tpu_custom_call.1} parent=1 // pred_check_branch
      %47 = sbr.rel (0) target = $region21
    $region20: #{tpu_custom_call.1} parent=1 // pred_region
      _
    $region21: #{tpu_custom_call.1} parent=1 // pred_fallthru
      _
    // Predicated region
    $region22: #{tpu_custom_call.1} parent=1 // pred_check
      _
    $region23: #{tpu_custom_call.1} parent=1 // pred_check_branch
      %49 = sbr.rel (0) target = $region25
    $region24: #{tpu_custom_call.1} parent=1 // pred_region
      %s51 = ssub.s32 512, 512
      %52 = vsyncadd [#allocation6], %s51
      %s53 = sshll.u32 [#allocation7], 4
      %s54 = int_to_ptr.vmem [resolvable:$true] %s53
      %59 = dma.hbm_to_vmem [thread:$0]  %s5, 512, %s54, [#allocation6], 128, 128, 8
    $region25: #{tpu_custom_call.1} parent=1 // pred_fallthru
      _
    // Predicated region
    $region26: #{tpu_custom_call.1} parent=1 // pred_check
      _
    $region27: #{tpu_custom_call.1} parent=1 // pred_check_branch
      %61 = sbr.rel (0) target = $region29
    $region28: #{tpu_custom_call.1} parent=1 // pred_region
      _
    $region29: #{tpu_custom_call.1} parent=1 // pred_fallthru
      _
    // Predicated region
    $region30: #{tpu_custom_call.1} parent=1 // pred_check
      _
    $region31: #{tpu_custom_call.1} parent=1 // pred_check_branch
      %63 = sbr.rel (0) target = $region33
    $region32: #{tpu_custom_call.1} parent=1 // pred_region
      %s65 = ssub.s32 2048, 2048
      %66 = vsyncadd [#allocation9], %s65
      %s67 = sshll.u32 [#allocation8], 4
      %s68 = int_to_ptr.vmem [resolvable:$true] %s67
      %73 = dma.hbm_to_vmem [thread:$0]  %s7, 2048, %s68, [#allocation9], 128, 128, 8
    $region33: #{tpu_custom_call.1} parent=1 // pred_fallthru
      _
    // Predicated region
    $region34: #{tpu_custom_call.1} parent=1 // pred_check
      _
    $region35: #{tpu_custom_call.1} parent=1 // pred_check_branch
      %75 = sbr.rel (0) target = $region37
    $region36: #{tpu_custom_call.1} parent=1 // pred_region
      _
    $region37: #{tpu_custom_call.1} parent=1 // pred_fallthru
      _
    // Predicated region
    $region38: #{tpu_custom_call.1} parent=1 // pred_check
      _
    $region39: #{tpu_custom_call.1} parent=1 // pred_check_branch
      %77 = sbr.rel (0) target = $region41
    $region40: #{tpu_custom_call.1} parent=1 // pred_region
      %78 = dma.done [#allocation3], 2048
    $region41: #{tpu_custom_call.1} parent=1 // pred_fallthru
      _
    // Predicated region
    $region42: #{tpu_custom_call.1} parent=1 // pred_check
      _
    $region43: #{tpu_custom_call.1} parent=1 // pred_check_branch
      %80 = sbr.rel (0) target = $region45
    $region44: #{tpu_custom_call.1} parent=1 // pred_region
      %81 = dma.done [#allocation6], 512
    $region45: #{tpu_custom_call.1} parent=1 // pred_fallthru
      _
    // Predicated region
    $region46: #{tpu_custom_call.1} parent=1 // pred_check
      _
    $region47: #{tpu_custom_call.1} parent=1 // pred_check_branch
      %83 = sbr.rel (0) target = $region49
    $region48: #{tpu_custom_call.1} parent=1 // pred_region
      %84 = dma.done [#allocation6], 512
    $region49: #{tpu_custom_call.1} parent=1 // pred_fallthru
      _
    // Predicated region
    $region50: #{tpu_custom_call.1} parent=1 // pred_check
      _
    $region51: #{tpu_custom_call.1} parent=1 // pred_check_branch
      %86 = sbr.rel (0) target = $region53
    $region52: #{tpu_custom_call.1} parent=1 // pred_region
      %87 = dma.done [#allocation9], 2048
    $region53: #{tpu_custom_call.1} parent=1 // pred_fallthru
      _
    %v88 = vld [vmem:[%s1] sm:$0xff]
    %v89 = vld [vmem:[%s1 + $0x8] sm:$0xff]
    %v90 = vld [vmem:[%s2] sm:$0xff]
    %v91 = vld [vmem:[%s2 + $0x8] sm:$0xff]
    %v92 = vld [vmem:[#allocation5] sm:$0xff]
    %v93 = vld [vmem:[#allocation5 + $0x8] sm:$0xff]
    %v94 = vld [vmem:[#allocation5 + $0x10] sm:$0xff]
    %v95 = vld [vmem:[#allocation5 + $0x18] sm:$0xff]
    %v96 = vld [vmem:[%s4] sm:$0x1]
    %v97 = vld [vmem:[#allocation2] sm:$0xff]
    %v98 = vld [vmem:[#allocation2 + $0x8] sm:$0xff]
    %v99 = vld [vmem:[#allocation2 + $0x10] sm:$0xff]
    %v100 = vld [vmem:[#allocation2 + $0x18] sm:$0xff]
    %v101 = vld [vmem:[#allocation2 + $0x20] sm:$0xff]
    %v102 = vld [vmem:[#allocation2 + $0x28] sm:$0xff]
    %v103 = vld [vmem:[#allocation2 + $0x30] sm:$0xff]
    %v104 = vld [vmem:[#allocation2 + $0x38] sm:$0xff]
    %v105 = vld [vmem:[#allocation2 + $0x40] sm:$0xff]
    %v106 = vld [vmem:[#allocation2 + $0x48] sm:$0xff]
    %v107 = vld [vmem:[#allocation2 + $0x50] sm:$0xff]
    %v108 = vld [vmem:[#allocation2 + $0x58] sm:$0xff]
    %v109 = vld [vmem:[#allocation2 + $0x60] sm:$0xff]
    %v110 = vld [vmem:[#allocation2 + $0x68] sm:$0xff]
    %v111 = vld [vmem:[#allocation2 + $0x70] sm:$0xff]
    %v112 = vld [vmem:[#allocation2 + $0x78] sm:$0xff]
    %v114 = vlaneseq
    %v115 = vshrl.u32 %v114, 7
    %v116 = vsub.s32 0, %v115
    %v117 = vrot.slane %v96, %v116
    %vm119 = vcmask 130048
    %v121 = vsel %vm119, %v97, 0
    %v124 = vsel %vm119, %v98, 0
    %v127 = vsel %vm119, %v99, 0
    %v130 = vsel %vm119, %v100, 0
    %v133 = vsel %vm119, %v101, 0
    %v136 = vsel %vm119, %v102, 0
    %v139 = vsel %vm119, %v103, 0
    %v142 = vsel %vm119, %v104, 0
    %v145 = vsel %vm119, %v105, 0
    %v148 = vsel %vm119, %v106, 0
    %v151 = vsel %vm119, %v107, 0
    %v154 = vsel %vm119, %v108, 0
    %v157 = vsel %vm119, %v109, 0
    %v160 = vsel %vm119, %v110, 0
    %v163 = vsel %vm119, %v111, 0
    %v166 = vsel %vm119, %v112, 0
    %168 = vmatprep.subr.mxu0 0.0
    %169 = vmatpush1.msra.mxu0 0.0
    %170 = vmatprep.subr.mxu0 0.0
    %171 = vmatpush1.msra.mxu0 0.0
    %172 = vmatprep.subr.mxu0 0.0
    %173 = vmatpush1.msra.mxu0 0.0
    %174 = vmatprep.subr.mxu0 0.0
    %175 = vmatpush1.msra.mxu0 0.0
    %176 = vmatprep.subr.mxu0 0.0
    %177 = vmatpush1.msra.mxu0 0.0
    %178 = vmatprep.subr.mxu0 0.0
    %179 = vmatpush1.msra.mxu0 0.0
    %180 = vmatprep.subr.mxu0 0.0
    %181 = vmatpush1.msra.mxu0 0.0
    %182 = vmatprep.subr.mxu0 0.0
    %183 = vmatpush1.msra.mxu0 0.0
    %184 = vmatprep.subr.mxu0 0.0
    %185 = vmatpush1.msra.mxu0 0.0
    %186 = vmatprep.subr.mxu0 0.0
    %187 = vmatpush1.msra.mxu0 0.0
    %188 = vmatprep.subr.mxu0 0.0
    %189 = vmatpush1.msra.mxu0 0.0
    %190 = vmatprep.subr.mxu0 0.0
    %191 = vmatpush1.msra.mxu0 0.0
    %192 = vmatprep.subr.mxu0 0.0
    %193 = vmatpush1.msra.mxu0 0.0
    %194 = vmatprep.subr.mxu0 0.0
    %195 = vmatpush1.msra.mxu0 0.0
    %196 = vmatprep.subr.mxu0 0.0
    %197 = vmatpush1.msra.mxu0 %v91
    %198 = vmatprep.subr.mxu0 0.0
    %199 = vmatpush1.msra.mxu0 %v90
    %200 = vmatprep.subr.mxu0 0.0
    %201 = vmatpush2.msra.mxu0 0.0
    %202 = vmatprep.subr.mxu0 0.0
    %203 = vmatpush2.msra.mxu0 0.0
    %204 = vmatprep.subr.mxu0 0.0
    %205 = vmatpush2.msra.mxu0 0.0
    %206 = vmatprep.subr.mxu0 0.0
    %207 = vmatpush2.msra.mxu0 0.0
    %208 = vmatprep.subr.mxu0 0.0
    %209 = vmatpush2.msra.mxu0 0.0
    %210 = vmatprep.subr.mxu0 0.0
    %211 = vmatpush2.msra.mxu0 0.0
    %212 = vmatprep.subr.mxu0 0.0
    %213 = vmatpush2.msra.mxu0 0.0
    %214 = vmatprep.subr.mxu0 0.0
    %215 = vmatpush2.msra.mxu0 0.0
    %216 = vmatprep.subr.mxu0 0.0
    %217 = vmatpush2.msra.mxu0 0.0
    %218 = vmatprep.subr.mxu0 0.0
    %219 = vmatpush2.msra.mxu0 0.0
    %220 = vmatprep.subr.mxu0 0.0
    %221 = vmatpush2.msra.mxu0 0.0
    %222 = vmatprep.subr.mxu0 0.0
    %223 = vmatpush2.msra.mxu0 0.0
    %224 = vmatprep.subr.mxu0 0.0
    %225 = vmatpush2.msra.mxu0 0.0
    %226 = vmatprep.subr.mxu0 0.0
    %227 = vmatpush2.msra.mxu0 0.0
    %228 = vmatprep.subr.mxu0 0.0
    %229 = vmatpush2.msra.mxu0 0.0
    %230 = vmatprep.subr.mxu0 0.0
    %231 = vmatpush2.msra.mxu0 0.0
    %232 = vmatprep.mubr.f32.mxu0 0.0
    %233 = vmatmul.mubr.f32.gmra.mxu0 %v121
    %v234 = vpop.f32.mrf.mxu0
    %v235 = vadd.f32 %v117, %v234
    %v236 = vpop.f32.mrf.mxu0
    %237 = vmatprep.mubr.f32.mxu0 0.0
    %238 = vmatmul.mubr.f32.gmra.mxu0 %v124
    %v239 = vpop.f32.mrf.mxu0
    %v240 = vadd.f32 %v117, %v239
    %v241 = vpop.f32.mrf.mxu0
    %242 = vmatprep.mubr.f32.mxu0 0.0
    %243 = vmatmul.mubr.f32.gmra.mxu0 %v127
    %v244 = vpop.f32.mrf.mxu0
    %v245 = vadd.f32 %v117, %v244
    %v246 = vpop.f32.mrf.mxu0
    %247 = vmatprep.mubr.f32.mxu0 0.0
    %248 = vmatmul.mubr.f32.gmra.mxu0 %v130
    %v249 = vpop.f32.mrf.mxu0
    %v250 = vadd.f32 %v117, %v249
    %v251 = vpop.f32.mrf.mxu0
    %252 = vmatprep.mubr.f32.mxu0 0.0
    %253 = vmatmul.mubr.f32.gmra.mxu0 %v133
    %v254 = vpop.f32.mrf.mxu0
    %v255 = vadd.f32 %v117, %v254
    %v256 = vpop.f32.mrf.mxu0
    %257 = vmatprep.mubr.f32.mxu0 0.0
    %258 = vmatmul.mubr.f32.gmra.mxu0 %v136
    %v259 = vpop.f32.mrf.mxu0
    %v260 = vadd.f32 %v117, %v259
    %v261 = vpop.f32.mrf.mxu0
    %262 = vmatprep.mubr.f32.mxu0 0.0
    %263 = vmatmul.mubr.f32.gmra.mxu0 %v139
    %v264 = vpop.f32.mrf.mxu0
    %v265 = vadd.f32 %v117, %v264
    %v266 = vpop.f32.mrf.mxu0
    %267 = vmatprep.mubr.f32.mxu0 0.0
    %268 = vmatmul.mubr.f32.gmra.mxu0 %v142
    %v269 = vpop.f32.mrf.mxu0
    %v270 = vadd.f32 %v117, %v269
    %v271 = vpop.f32.mrf.mxu0
    %272 = vmatprep.mubr.f32.mxu0 0.0
    %273 = vmatmul.mubr.f32.gmra.mxu0 %v145
    %v274 = vpop.f32.mrf.mxu0
    %v275 = vadd.f32 %v117, %v274
    %v276 = vpop.f32.mrf.mxu0
    %277 = vmatprep.mubr.f32.mxu0 0.0
    %278 = vmatmul.mubr.f32.gmra.mxu0 %v148
    %v279 = vpop.f32.mrf.mxu0
    %v280 = vadd.f32 %v117, %v279
    %v281 = vpop.f32.mrf.mxu0
    %282 = vmatprep.mubr.f32.mxu0 0.0
    %283 = vmatmul.mubr.f32.gmra.mxu0 %v151
    %v284 = vpop.f32.mrf.mxu0
    %v285 = vadd.f32 %v117, %v284
    %v286 = vpop.f32.mrf.mxu0
    %287 = vmatprep.mubr.f32.mxu0 0.0
    %288 = vmatmul.mubr.f32.gmra.mxu0 %v154
    %v289 = vpop.f32.mrf.mxu0
    %v290 = vadd.f32 %v117, %v289
    %v291 = vpop.f32.mrf.mxu0
    %292 = vmatprep.mubr.f32.mxu0 0.0
    %293 = vmatmul.mubr.f32.gmra.mxu0 %v157
    %v294 = vpop.f32.mrf.mxu0
    %v295 = vadd.f32 %v117, %v294
    %v296 = vpop.f32.mrf.mxu0
    %297 = vmatprep.mubr.f32.mxu0 0.0
    %298 = vmatmul.mubr.f32.gmra.mxu0 %v160
    %v299 = vpop.f32.mrf.mxu0
    %v300 = vadd.f32 %v117, %v299
    %v301 = vpop.f32.mrf.mxu0
    %302 = vmatprep.mubr.f32.mxu0 0.0
    %303 = vmatmul.mubr.f32.gmra.mxu0 %v163
    %v304 = vpop.f32.mrf.mxu0
    %v305 = vadd.f32 %v117, %v304
    %v306 = vpop.f32.mrf.mxu0
    %307 = vmatprep.mubr.f32.mxu0 0.0
    %308 = vmatmul.mubr.f32.gmra.mxu0 %v166
    %v309 = vpop.f32.mrf.mxu0
    %v310 = vadd.f32 %v117, %v309
    %v311 = vpop.f32.mrf.mxu0
    %312 = vdwg.mxu0
    %v313 = vlaneseq
    %v314 = vand.u32 %v313, 127
    %vm315 = vcmp.ge.s32.totalorder %v314, 0
    %vm316 = vcmp.lt.s32.totalorder %v314, 16
    %vm317 = vmand %vm315, %vm316
    %vm318 = vcmp.ge.s32.totalorder %v314, 32
    %vm319 = vcmp.lt.s32.totalorder %v314, 48
    %vm320 = vmand %vm318, %vm319
    %vm321 = vmor %vm317, %vm320
    %vm322 = vcmp.ge.s32.totalorder %v314, 64
    %vm323 = vcmp.lt.s32.totalorder %v314, 80
    %vm324 = vmand %vm322, %vm323
    %vm325 = vmor %vm321, %vm324
    %vm326 = vcmp.ge.s32.totalorder %v314, 96
    %vm327 = vcmp.lt.s32.totalorder %v314, 112
    %vm328 = vmand %vm326, %vm327
    %vm329 = vmor %vm325, %vm328
    %vm330 = vcmp.lt.s32.totalorder %v314, 96
    %v331 = vsel %vm330, 0.5, 1.0
    %v332 = vsel %vm329, 1, 0
    %vm333 = vcmp.eq.s32.totalorder %v332, 1
    %v334 = vsel %vm333, %v235, %v305
    %v335 = vsel %vm333, %v240, %v310
    %vm336 = vcmask 261120
    %v338 = vsel %vm336, 0.0, 0
    %340 = vmatprep.subr.mxu0 0.0
    %341 = vmatpush1.msra.mxu0 0.0
    %342 = vmatprep.subr.mxu0 0.0
    %343 = vmatpush1.msra.mxu0 0.0
    %344 = vmatprep.subr.mxu0 0.0
    %345 = vmatpush1.msra.mxu0 0.0
    %346 = vmatprep.subr.mxu0 0.0
    %347 = vmatpush1.msra.mxu0 0.0
    %348 = vmatprep.subr.mxu0 0.0
    %349 = vmatpush1.msra.mxu0 0.0
    %350 = vmatprep.subr.mxu0 0.0
    %351 = vmatpush1.msra.mxu0 0.0
    %352 = vmatprep.subr.mxu0 0.0
    %353 = vmatpush1.msra.mxu0 0.0
    %354 = vmatprep.subr.mxu0 0.0
    %355 = vmatpush1.msra.mxu0 0.0
    %356 = vmatprep.subr.mxu0 0.0
    %357 = vmatpush1.msra.mxu0 0.0
    %358 = vmatprep.subr.mxu0 0.0
    %359 = vmatpush1.msra.mxu0 0.0
    %360 = vmatprep.subr.mxu0 0.0
    %361 = vmatpush1.msra.mxu0 0.0
    %362 = vmatprep.subr.mxu0 0.0
    %363 = vmatpush1.msra.mxu0 0.0
    %364 = vmatprep.subr.mxu0 0.0
    %365 = vmatpush1.msra.mxu0 %v95
    %366 = vmatprep.subr.mxu0 0.0
    %367 = vmatpush1.msra.mxu0 %v94
    %368 = vmatprep.subr.mxu0 0.0
    %369 = vmatpush1.msra.mxu0 %v93
    %370 = vmatprep.subr.mxu0 0.0
    %371 = vmatpush1.msra.mxu0 %v92
    %372 = vmatprep.subr.mxu0 0.0
    %373 = vmatpush2.msra.mxu0 0.0
    %374 = vmatprep.subr.mxu0 0.0
    %375 = vmatpush2.msra.mxu0 0.0
    %376 = vmatprep.subr.mxu0 0.0
    %377 = vmatpush2.msra.mxu0 0.0
    %378 = vmatprep.subr.mxu0 0.0
    %379 = vmatpush2.msra.mxu0 0.0
    %380 = vmatprep.subr.mxu0 0.0
    %381 = vmatpush2.msra.mxu0 0.0
    %382 = vmatprep.subr.mxu0 0.0
    %383 = vmatpush2.msra.mxu0 0.0
    %384 = vmatprep.subr.mxu0 0.0
    %385 = vmatpush2.msra.mxu0 0.0
    %386 = vmatprep.subr.mxu0 0.0
    %387 = vmatpush2.msra.mxu0 0.0
    %388 = vmatprep.subr.mxu0 0.0
    %389 = vmatpush2.msra.mxu0 0.0
    %390 = vmatprep.subr.mxu0 0.0
    %391 = vmatpush2.msra.mxu0 0.0
    %392 = vmatprep.subr.mxu0 0.0
    %393 = vmatpush2.msra.mxu0 0.0
    %394 = vmatprep.subr.mxu0 0.0
    %395 = vmatpush2.msra.mxu0 0.0
    %396 = vmatprep.subr.mxu0 0.0
    %397 = vmatpush2.msra.mxu0 0.0
    %398 = vmatprep.subr.mxu0 0.0
    %399 = vmatpush2.msra.mxu0 0.0
    %400 = vmatprep.subr.mxu0 0.0
    %401 = vmatpush2.msra.mxu0 0.0
    %402 = vmatprep.subr.mxu0 0.0
    %403 = vmatpush2.msra.mxu0 0.0
    %404 = vmatprep.mubr.f32.mxu0 0.0
    %405 = vmatmul.mubr.f32.gmra.mxu0 %v338
    %v406 = vpop.f32.mrf.mxu0
    %v407 = vadd.f32 0.0, %v406
    %v408 = vpop.f32.mrf.mxu0
    %409 = vmatprep.mubr.f32.mxu0 0.0
    %410 = vmatmul.mubr.f32.gmra.mxu0 %v338
    %v411 = vpop.f32.mrf.mxu0
    %v412 = vadd.f32 0.0, %v411
    %v413 = vpop.f32.mrf.mxu0
    %414 = vdwg.mxu0
    %v415 = vadd.f32 %v334, %v407
    %v416 = vadd.f32 %v335, %v412
    %v417 = vmul.f32 %v415, %v331
    %v418 = vmul.f32 %v416, %v331
    %v419 = vtanh.pop %v417
    %v420 = vtanh.pop %v418
    %v421 = vmul.f32 %v419, 0.5
    %v422 = vmul.f32 %v420, 0.5
    %v423 = vadd.f32 %v421, 0.5
    %v424 = vadd.f32 %v422, 0.5
    %v425 = vmul.f32 %v423, 0.0
    %v426 = vmul.f32 %v424, 0.0
    %429 = vrot.lane.b32.xlu0 %v419, 32
    %v430 = vpop.permute.xlu0 %429
    %431 = vrot.lane.b32.xlu0 %v420, 32
    %v432 = vpop.permute.xlu0 %431
    %v435 = vmul.f32 %v423, %v430
    %v436 = vmul.f32 %v424, %v432
    %439 = vrot.lane.b32.xlu0 %v435, 32
    %v440 = vpop.permute.xlu0 %439
    %441 = vrot.lane.b32.xlu0 %v436, 32
    %v442 = vpop.permute.xlu0 %441
    %v445 = vadd.f32 %v425, %v440
    %v446 = vadd.f32 %v426, %v442
    %v447 = vtanh.pop %v445
    %v448 = vtanh.pop %v446
    %451 = vrot.lane.b32.xlu0 %v447, 32
    %v452 = vpop.permute.xlu0 %451
    %453 = vrot.lane.b32.xlu0 %v448, 32
    %v454 = vpop.permute.xlu0 %453
    %v457 = vmul.f32 %v423, %v452
    %v458 = vmul.f32 %v424, %v454
    %v459 = vsel %vm316, 0, 7
    %460 = vset.pattern.permute.xlu0 0
    %461 = vperm.xlu0 %460, %v88
    %v462 = vpop.permute.xlu0 %461
    %463 = vset.pattern.permute.xlu0 0
    %464 = vperm.xlu0 %463, %v89
    %v465 = vpop.permute.xlu0 %464
    %vm466 = vcmp.gt.s32.totalorder %v462, %v459
    %vm467 = vcmp.gt.s32.totalorder %v465, %v459
    %470 = vrot.lane.b32.xlu0 %v457, 64
    %v471 = vpop.permute.xlu0 %470
    %472 = vrot.lane.b32.xlu0 %v458, 64
    %v473 = vpop.permute.xlu0 %472
    %v476 = vsel %vm466, %v471, 0.0
    %v477 = vsel %vm467, %v473, 0.0
    %480 = vrot.lane.b32.xlu0 %v445, 96
    %v481 = vpop.permute.xlu0 %480
    %482 = vrot.lane.b32.xlu0 %v446, 96
    %v483 = vpop.permute.xlu0 %482
    %v486 = vsel %vm466, %v481, 0.0
    %v487 = vsel %vm467, %v483, 0.0
    %v488 = vsel %vm466, %v471, -inf
    %v489 = vsel %vm467, %v473, -inf
    %v490 = vmax.f32 %v488, -10000.0
    %v491 = vmax.f32 %v489, -10000.0
    %v492 = vsel %vm333, %v245, %v295
    %v493 = vsel %vm333, %v250, %v300
    %v495 = vsel %vm336, %v476, 0
    %v498 = vsel %vm336, %v477, 0
    %500 = vmatprep.subr.mxu0 0.0
    %501 = vmatpush1.msra.mxu0 0.0
    %502 = vmatprep.subr.mxu0 0.0
    %503 = vmatpush1.msra.mxu0 0.0
    %504 = vmatprep.subr.mxu0 0.0
    %505 = vmatpush1.msra.mxu0 0.0
    %506 = vmatprep.subr.mxu0 0.0
    %507 = vmatpush1.msra.mxu0 0.0
    %508 = vmatprep.subr.mxu0 0.0
    %509 = vmatpush1.msra.mxu0 0.0
    %510 = vmatprep.subr.mxu0 0.0
    %511 = vmatpush1.msra.mxu0 0.0
    %512 = vmatprep.subr.mxu0 0.0
    %513 = vmatpush1.msra.mxu0 0.0
    %514 = vmatprep.subr.mxu0 0.0
    %515 = vmatpush1.msra.mxu0 0.0
    %516 = vmatprep.subr.mxu0 0.0
    %517 = vmatpush1.msra.mxu0 0.0
    %518 = vmatprep.subr.mxu0 0.0
    %519 = vmatpush1.msra.mxu0 0.0
    %520 = vmatprep.subr.mxu0 0.0
    %521 = vmatpush1.msra.mxu0 0.0
    %522 = vmatprep.subr.mxu0 0.0
    %523 = vmatpush1.msra.mxu0 0.0
    %524 = vmatprep.subr.mxu0 0.0
    %525 = vmatpush1.msra.mxu0 %v95
    %526 = vmatprep.subr.mxu0 0.0
    %527 = vmatpush1.msra.mxu0 %v94
    %528 = vmatprep.subr.mxu0 0.0
    %529 = vmatpush1.msra.mxu0 %v93
    %530 = vmatprep.subr.mxu0 0.0
    %531 = vmatpush1.msra.mxu0 %v92
    %532 = vmatprep.subr.mxu0 0.0
    %533 = vmatpush2.msra.mxu0 0.0
    %534 = vmatprep.subr.mxu0 0.0
    %535 = vmatpush2.msra.mxu0 0.0
    %536 = vmatprep.subr.mxu0 0.0
    %537 = vmatpush2.msra.mxu0 0.0
    %538 = vmatprep.subr.mxu0 0.0
    %539 = vmatpush2.msra.mxu0 0.0
    %540 = vmatprep.subr.mxu0 0.0
    %541 = vmatpush2.msra.mxu0 0.0
    %542 = vmatprep.subr.mxu0 0.0
    %543 = vmatpush2.msra.mxu0 0.0
    %544 = vmatprep.subr.mxu0 0.0
    %545 = vmatpush2.msra.mxu0 0.0
    %546 = vmatprep.subr.mxu0 0.0
    %547 = vmatpush2.msra.mxu0 0.0
    %548 = vmatprep.subr.mxu0 0.0
    %549 = vmatpush2.msra.mxu0 0.0
    %550 = vmatprep.subr.mxu0 0.0
    %551 = vmatpush2.msra.mxu0 0.0
    %552 = vmatprep.subr.mxu0 0.0
    %553 = vmatpush2.msra.mxu0 0.0
    %554 = vmatprep.subr.mxu0 0.0
    %555 = vmatpush2.msra.mxu0 0.0
    %556 = vmatprep.subr.mxu0 0.0
    %557 = vmatpush2.msra.mxu0 0.0
    %558 = vmatprep.subr.mxu0 0.0
    %559 = vmatpush2.msra.mxu0 0.0
    %560 = vmatprep.subr.mxu0 0.0
    %561 = vmatpush2.msra.mxu0 0.0
    %562 = vmatprep.subr.mxu0 0.0
    %563 = vmatpush2.msra.mxu0 0.0
    %564 = vmatprep.mubr.f32.mxu0 0.0
    %565 = vmatmul.mubr.f32.gmra.mxu0 %v495
    %v566 = vpop.f32.mrf.mxu0
    %v567 = vadd.f32 0.0, %v566
    %v568 = vpop.f32.mrf.mxu0
    %569 = vmatprep.mubr.f32.mxu0 0.0
    %570 = vmatmul.mubr.f32.gmra.mxu0 %v498
    %v571 = vpop.f32.mrf.mxu0
    %v572 = vadd.f32 0.0, %v571
    %v573 = vpop.f32.mrf.mxu0
    %574 = vdwg.mxu0
    %v575 = vadd.f32 %v492, %v567
    %v576 = vadd.f32 %v493, %v572
    %v577 = vmul.f32 %v575, %v331
    %v578 = vmul.f32 %v576, %v331
    %v579 = vtanh.pop %v577
    %v580 = vtanh.pop %v578
    %v581 = vmul.f32 %v579, 0.5
    %v582 = vmul.f32 %v580, 0.5
    %v583 = vadd.f32 %v581, 0.5
    %v584 = vadd.f32 %v582, 0.5
    %587 = vrot.lane.b32.xlu0 %v486, 32
    %v588 = vpop.permute.xlu0 %587
    %589 = vrot.lane.b32.xlu0 %v487, 32
    %v590 = vpop.permute.xlu0 %589
    %v593 = vmul.f32 %v583, %v588
    %v594 = vmul.f32 %v584, %v590
    %597 = vrot.lane.b32.xlu0 %v579, 32
    %v598 = vpop.permute.xlu0 %597
    %599 = vrot.lane.b32.xlu0 %v580, 32
    %v600 = vpop.permute.xlu0 %599
    %v603 = vmul.f32 %v583, %v598
    %v604 = vmul.f32 %v584, %v600
    %607 = vrot.lane.b32.xlu0 %v603, 32
    %v608 = vpop.permute.xlu0 %607
    %609 = vrot.lane.b32.xlu0 %v604, 32
    %v610 = vpop.permute.xlu0 %609
    %v613 = vadd.f32 %v593, %v608
    %v614 = vadd.f32 %v594, %v610
    %v615 = vtanh.pop %v613
    %v616 = vtanh.pop %v614
    %619 = vrot.lane.b32.xlu0 %v615, 32
    %v620 = vpop.permute.xlu0 %619
    %621 = vrot.lane.b32.xlu0 %v616, 32
    %v622 = vpop.permute.xlu0 %621
    %v625 = vmul.f32 %v583, %v620
    %v626 = vmul.f32 %v584, %v622
    %v627 = vsel %vm316, 1, 6
    %vm628 = vcmp.gt.s32.totalorder %v462, %v627
    %vm629 = vcmp.gt.s32.totalorder %v465, %v627
    %632 = vrot.lane.b32.xlu0 %v625, 64
    %v633 = vpop.permute.xlu0 %632
    %634 = vrot.lane.b32.xlu0 %v626, 64
    %v635 = vpop.permute.xlu0 %634
    %v638 = vsel %vm628, %v633, %v476
    %v639 = vsel %vm629, %v635, %v477
    %642 = vrot.lane.b32.xlu0 %v613, 96
    %v643 = vpop.permute.xlu0 %642
    %644 = vrot.lane.b32.xlu0 %v614, 96
    %v645 = vpop.permute.xlu0 %644
    %v648 = vsel %vm628, %v643, %v486
    %v649 = vsel %vm629, %v645, %v487
    %v650 = vsel %vm628, %v633, -inf
    %v651 = vsel %vm629, %v635, -inf
    %v652 = vmax.f32 %v490, %v650
    %v653 = vmax.f32 %v491, %v651
    %v654 = vsel %vm333, %v255, %v285
    %v655 = vsel %vm333, %v260, %v290
    %v657 = vsel %vm336, %v638, 0
    %v660 = vsel %vm336, %v639, 0
    %662 = vmatprep.subr.mxu0 0.0
    %663 = vmatpush1.msra.mxu0 0.0
    %664 = vmatprep.subr.mxu0 0.0
    %665 = vmatpush1.msra.mxu0 0.0
    %666 = vmatprep.subr.mxu0 0.0
    %667 = vmatpush1.msra.mxu0 0.0
    %668 = vmatprep.subr.mxu0 0.0
    %669 = vmatpush1.msra.mxu0 0.0
    %670 = vmatprep.subr.mxu0 0.0
    %671 = vmatpush1.msra.mxu0 0.0
    %672 = vmatprep.subr.mxu0 0.0
    %673 = vmatpush1.msra.mxu0 0.0
    %674 = vmatprep.subr.mxu0 0.0
    %675 = vmatpush1.msra.mxu0 0.0
    %676 = vmatprep.subr.mxu0 0.0
    %677 = vmatpush1.msra.mxu0 0.0
    %678 = vmatprep.subr.mxu0 0.0
    %679 = vmatpush1.msra.mxu0 0.0
    %680 = vmatprep.subr.mxu0 0.0
    %681 = vmatpush1.msra.mxu0 0.0
    %682 = vmatprep.subr.mxu0 0.0
    %683 = vmatpush1.msra.mxu0 0.0
    %684 = vmatprep.subr.mxu0 0.0
    %685 = vmatpush1.msra.mxu0 0.0
    %686 = vmatprep.subr.mxu0 0.0
    %687 = vmatpush1.msra.mxu0 %v95
    %688 = vmatprep.subr.mxu0 0.0
    %689 = vmatpush1.msra.mxu0 %v94
    %690 = vmatprep.subr.mxu0 0.0
    %691 = vmatpush1.msra.mxu0 %v93
    %692 = vmatprep.subr.mxu0 0.0
    %693 = vmatpush1.msra.mxu0 %v92
    %694 = vmatprep.subr.mxu0 0.0
    %695 = vmatpush2.msra.mxu0 0.0
    %696 = vmatprep.subr.mxu0 0.0
    %697 = vmatpush2.msra.mxu0 0.0
    %698 = vmatprep.subr.mxu0 0.0
    %699 = vmatpush2.msra.mxu0 0.0
    %700 = vmatprep.subr.mxu0 0.0
    %701 = vmatpush2.msra.mxu0 0.0
    %702 = vmatprep.subr.mxu0 0.0
    %703 = vmatpush2.msra.mxu0 0.0
    %704 = vmatprep.subr.mxu0 0.0
    %705 = vmatpush2.msra.mxu0 0.0
    %706 = vmatprep.subr.mxu0 0.0
    %707 = vmatpush2.msra.mxu0 0.0
    %708 = vmatprep.subr.mxu0 0.0
    %709 = vmatpush2.msra.mxu0 0.0
    %710 = vmatprep.subr.mxu0 0.0
    %711 = vmatpush2.msra.mxu0 0.0
    %712 = vmatprep.subr.mxu0 0.0
    %713 = vmatpush2.msra.mxu0 0.0
    %714 = vmatprep.subr.mxu0 0.0
    %715 = vmatpush2.msra.mxu0 0.0
    %716 = vmatprep.subr.mxu0 0.0
    %717 = vmatpush2.msra.mxu0 0.0
    %718 = vmatprep.subr.mxu0 0.0
    %719 = vmatpush2.msra.mxu0 0.0
    %720 = vmatprep.subr.mxu0 0.0
    %721 = vmatpush2.msra.mxu0 0.0
    %722 = vmatprep.subr.mxu0 0.0
    %723 = vmatpush2.msra.mxu0 0.0
    %724 = vmatprep.subr.mxu0 0.0
    %725 = vmatpush2.msra.mxu0 0.0
    %726 = vmatprep.mubr.f32.mxu0 0.0
    %727 = vmatmul.mubr.f32.gmra.mxu0 %v657
    %v728 = vpop.f32.mrf.mxu0
    %v729 = vadd.f32 0.0, %v728
    %v730 = vpop.f32.mrf.mxu0
    %731 = vmatprep.mubr.f32.mxu0 0.0
    %732 = vmatmul.mubr.f32.gmra.mxu0 %v660
    %v733 = vpop.f32.mrf.mxu0
    %v734 = vadd.f32 0.0, %v733
    %v735 = vpop.f32.mrf.mxu0
    %736 = vdwg.mxu0
    %v737 = vadd.f32 %v654, %v729
    %v738 = vadd.f32 %v655, %v734
    %v739 = vmul.f32 %v737, %v331
    %v740 = vmul.f32 %v738, %v331
    %v741 = vtanh.pop %v739
    %v742 = vtanh.pop %v740
    %v743 = vmul.f32 %v741, 0.5
    %v744 = vmul.f32 %v742, 0.5
    %v745 = vadd.f32 %v743, 0.5
    %v746 = vadd.f32 %v744, 0.5
    %749 = vrot.lane.b32.xlu0 %v648, 32
    %v750 = vpop.permute.xlu0 %749
    %751 = vrot.lane.b32.xlu0 %v649, 32
    %v752 = vpop.permute.xlu0 %751
    %v755 = vmul.f32 %v745, %v750
    %v756 = vmul.f32 %v746, %v752
    %759 = vrot.lane.b32.xlu0 %v741, 32
    %v760 = vpop.permute.xlu0 %759
    %761 = vrot.lane.b32.xlu0 %v742, 32
    %v762 = vpop.permute.xlu0 %761
    %v765 = vmul.f32 %v745, %v760
    %v766 = vmul.f32 %v746, %v762
    %769 = vrot.lane.b32.xlu0 %v765, 32
    %v770 = vpop.permute.xlu0 %769
    %771 = vrot.lane.b32.xlu0 %v766, 32
    %v772 = vpop.permute.xlu0 %771
    %v775 = vadd.f32 %v755, %v770
    %v776 = vadd.f32 %v756, %v772
    %v777 = vtanh.pop %v775
    %v778 = vtanh.pop %v776
    %781 = vrot.lane.b32.xlu0 %v777, 32
    %v782 = vpop.permute.xlu0 %781
    %783 = vrot.lane.b32.xlu0 %v778, 32
    %v784 = vpop.permute.xlu0 %783
    %v787 = vmul.f32 %v745, %v782
    %v788 = vmul.f32 %v746, %v784
    %v789 = vsel %vm316, 2, 5
    %vm790 = vcmp.gt.s32.totalorder %v462, %v789
    %vm791 = vcmp.gt.s32.totalorder %v465, %v789
    %794 = vrot.lane.b32.xlu0 %v787, 64
    %v795 = vpop.permute.xlu0 %794
    %796 = vrot.lane.b32.xlu0 %v788, 64
    %v797 = vpop.permute.xlu0 %796
    %v800 = vsel %vm790, %v795, %v638
    %v801 = vsel %vm791, %v797, %v639
    %804 = vrot.lane.b32.xlu0 %v775, 96
    %v805 = vpop.permute.xlu0 %804
    %806 = vrot.lane.b32.xlu0 %v776, 96
    %v807 = vpop.permute.xlu0 %806
    %v810 = vsel %vm790, %v805, %v648
    %v811 = vsel %vm791, %v807, %v649
    %v812 = vsel %vm790, %v795, -inf
    %v813 = vsel %vm791, %v797, -inf
    %v814 = vmax.f32 %v652, %v812
    %v815 = vmax.f32 %v653, %v813
    %v816 = vsel %vm333, %v265, %v275
    %v817 = vsel %vm333, %v270, %v280
    %v819 = vsel %vm336, %v800, 0
    %v822 = vsel %vm336, %v801, 0
    %824 = vmatprep.subr.mxu0 0.0
    %825 = vmatpush1.msra.mxu0 0.0
    %826 = vmatprep.subr.mxu0 0.0
    %827 = vmatpush1.msra.mxu0 0.0
    %828 = vmatprep.subr.mxu0 0.0
    %829 = vmatpush1.msra.mxu0 0.0
    %830 = vmatprep.subr.mxu0 0.0
    %831 = vmatpush1.msra.mxu0 0.0
    %832 = vmatprep.subr.mxu0 0.0
    %833 = vmatpush1.msra.mxu0 0.0
    %834 = vmatprep.subr.mxu0 0.0
    %835 = vmatpush1.msra.mxu0 0.0
    %836 = vmatprep.subr.mxu0 0.0
    %837 = vmatpush1.msra.mxu0 0.0
    %838 = vmatprep.subr.mxu0 0.0
    %839 = vmatpush1.msra.mxu0 0.0
    %840 = vmatprep.subr.mxu0 0.0
    %841 = vmatpush1.msra.mxu0 0.0
    %842 = vmatprep.subr.mxu0 0.0
    %843 = vmatpush1.msra.mxu0 0.0
    %844 = vmatprep.subr.mxu0 0.0
    %845 = vmatpush1.msra.mxu0 0.0
    %846 = vmatprep.subr.mxu0 0.0
    %847 = vmatpush1.msra.mxu0 0.0
    %848 = vmatprep.subr.mxu0 0.0
    %849 = vmatpush1.msra.mxu0 %v95
    %850 = vmatprep.subr.mxu0 0.0
    %851 = vmatpush1.msra.mxu0 %v94
    %852 = vmatprep.subr.mxu0 0.0
    %853 = vmatpush1.msra.mxu0 %v93
    %854 = vmatprep.subr.mxu0 0.0
    %855 = vmatpush1.msra.mxu0 %v92
    %856 = vmatprep.subr.mxu0 0.0
    %857 = vmatpush2.msra.mxu0 0.0
    %858 = vmatprep.subr.mxu0 0.0
    %859 = vmatpush2.msra.mxu0 0.0
    %860 = vmatprep.subr.mxu0 0.0
    %861 = vmatpush2.msra.mxu0 0.0
    %862 = vmatprep.subr.mxu0 0.0
    %863 = vmatpush2.msra.mxu0 0.0
    %864 = vmatprep.subr.mxu0 0.0
    %865 = vmatpush2.msra.mxu0 0.0
    %866 = vmatprep.subr.mxu0 0.0
    %867 = vmatpush2.msra.mxu0 0.0
    %868 = vmatprep.subr.mxu0 0.0
    %869 = vmatpush2.msra.mxu0 0.0
    %870 = vmatprep.subr.mxu0 0.0
    %871 = vmatpush2.msra.mxu0 0.0
    %872 = vmatprep.subr.mxu0 0.0
    %873 = vmatpush2.msra.mxu0 0.0
    %874 = vmatprep.subr.mxu0 0.0
    %875 = vmatpush2.msra.mxu0 0.0
    %876 = vmatprep.subr.mxu0 0.0
    %877 = vmatpush2.msra.mxu0 0.0
    %878 = vmatprep.subr.mxu0 0.0
    %879 = vmatpush2.msra.mxu0 0.0
    %880 = vmatprep.subr.mxu0 0.0
    %881 = vmatpush2.msra.mxu0 0.0
    %882 = vmatprep.subr.mxu0 0.0
    %883 = vmatpush2.msra.mxu0 0.0
    %884 = vmatprep.subr.mxu0 0.0
    %885 = vmatpush2.msra.mxu0 0.0
    %886 = vmatprep.subr.mxu0 0.0
    %887 = vmatpush2.msra.mxu0 0.0
    %888 = vmatprep.mubr.f32.mxu0 0.0
    %889 = vmatmul.mubr.f32.gmra.mxu0 %v819
    %v890 = vpop.f32.mrf.mxu0
    %v891 = vadd.f32 0.0, %v890
    %v892 = vpop.f32.mrf.mxu0
    %893 = vmatprep.mubr.f32.mxu0 0.0
    %894 = vmatmul.mubr.f32.gmra.mxu0 %v822
    %v895 = vpop.f32.mrf.mxu0
    %v896 = vadd.f32 0.0, %v895
    %v897 = vpop.f32.mrf.mxu0
    %898 = vdwg.mxu0
    %v899 = vadd.f32 %v816, %v891
    %v900 = vadd.f32 %v817, %v896
    %v901 = vmul.f32 %v899, %v331
    %v902 = vmul.f32 %v900, %v331
    %v903 = vtanh.pop %v901
    %v904 = vtanh.pop %v902
    %v905 = vmul.f32 %v903, 0.5
    %v906 = vmul.f32 %v904, 0.5
    %v907 = vadd.f32 %v905, 0.5
    %v908 = vadd.f32 %v906, 0.5
    %911 = vrot.lane.b32.xlu0 %v810, 32
    %v912 = vpop.permute.xlu0 %911
    %913 = vrot.lane.b32.xlu0 %v811, 32
    %v914 = vpop.permute.xlu0 %913
    %v917 = vmul.f32 %v907, %v912
    %v918 = vmul.f32 %v908, %v914
    %921 = vrot.lane.b32.xlu0 %v903, 32
    %v922 = vpop.permute.xlu0 %921
    %923 = vrot.lane.b32.xlu0 %v904, 32
    %v924 = vpop.permute.xlu0 %923
    %v927 = vmul.f32 %v907, %v922
    %v928 = vmul.f32 %v908, %v924
    %931 = vrot.lane.b32.xlu0 %v927, 32
    %v932 = vpop.permute.xlu0 %931
    %933 = vrot.lane.b32.xlu0 %v928, 32
    %v934 = vpop.permute.xlu0 %933
    %v937 = vadd.f32 %v917, %v932
    %v938 = vadd.f32 %v918, %v934
    %v939 = vtanh.pop %v937
    %v940 = vtanh.pop %v938
    %943 = vrot.lane.b32.xlu0 %v939, 32
    %v944 = vpop.permute.xlu0 %943
    %945 = vrot.lane.b32.xlu0 %v940, 32
    %v946 = vpop.permute.xlu0 %945
    %v949 = vmul.f32 %v907, %v944
    %v950 = vmul.f32 %v908, %v946
    %v951 = vsel %vm316, 3, 4
    %vm952 = vcmp.gt.s32.totalorder %v462, %v951
    %vm953 = vcmp.gt.s32.totalorder %v465, %v951
    %956 = vrot.lane.b32.xlu0 %v949, 64
    %v957 = vpop.permute.xlu0 %956
    %958 = vrot.lane.b32.xlu0 %v950, 64
    %v959 = vpop.permute.xlu0 %958
    %v962 = vsel %vm952, %v957, %v800
    %v963 = vsel %vm953, %v959, %v801
    %966 = vrot.lane.b32.xlu0 %v937, 96
    %v967 = vpop.permute.xlu0 %966
    %968 = vrot.lane.b32.xlu0 %v938, 96
    %v969 = vpop.permute.xlu0 %968
    %v972 = vsel %vm952, %v967, %v810
    %v973 = vsel %vm953, %v969, %v811
    %v974 = vsel %vm952, %v957, -inf
    %v975 = vsel %vm953, %v959, -inf
    %v976 = vmax.f32 %v814, %v974
    %v977 = vmax.f32 %v815, %v975
    %v978 = vsel %vm333, %v275, %v265
    %v979 = vsel %vm333, %v280, %v270
    %v981 = vsel %vm336, %v962, 0
    %v984 = vsel %vm336, %v963, 0
    %986 = vmatprep.subr.mxu0 0.0
    %987 = vmatpush1.msra.mxu0 0.0
    %988 = vmatprep.subr.mxu0 0.0
    %989 = vmatpush1.msra.mxu0 0.0
    %990 = vmatprep.subr.mxu0 0.0
    %991 = vmatpush1.msra.mxu0 0.0
    %992 = vmatprep.subr.mxu0 0.0
    %993 = vmatpush1.msra.mxu0 0.0
    %994 = vmatprep.subr.mxu0 0.0
    %995 = vmatpush1.msra.mxu0 0.0
    %996 = vmatprep.subr.mxu0 0.0
    %997 = vmatpush1.msra.mxu0 0.0
    %998 = vmatprep.subr.mxu0 0.0
    %999 = vmatpush1.msra.mxu0 0.0
    %1000 = vmatprep.subr.mxu0 0.0
    %1001 = vmatpush1.msra.mxu0 0.0
    %1002 = vmatprep.subr.mxu0 0.0
    %1003 = vmatpush1.msra.mxu0 0.0
    %1004 = vmatprep.subr.mxu0 0.0
    %1005 = vmatpush1.msra.mxu0 0.0
    %1006 = vmatprep.subr.mxu0 0.0
    %1007 = vmatpush1.msra.mxu0 0.0
    %1008 = vmatprep.subr.mxu0 0.0
    %1009 = vmatpush1.msra.mxu0 0.0
    %1010 = vmatprep.subr.mxu0 0.0
    %1011 = vmatpush1.msra.mxu0 %v95
    %1012 = vmatprep.subr.mxu0 0.0
    %1013 = vmatpush1.msra.mxu0 %v94
    %1014 = vmatprep.subr.mxu0 0.0
    %1015 = vmatpush1.msra.mxu0 %v93
    %1016 = vmatprep.subr.mxu0 0.0
    %1017 = vmatpush1.msra.mxu0 %v92
    %1018 = vmatprep.subr.mxu0 0.0
    %1019 = vmatpush2.msra.mxu0 0.0
    %1020 = vmatprep.subr.mxu0 0.0
    %1021 = vmatpush2.msra.mxu0 0.0
    %1022 = vmatprep.subr.mxu0 0.0
    %1023 = vmatpush2.msra.mxu0 0.0
    %1024 = vmatprep.subr.mxu0 0.0
    %1025 = vmatpush2.msra.mxu0 0.0
    %1026 = vmatprep.subr.mxu0 0.0
    %1027 = vmatpush2.msra.mxu0 0.0
    %1028 = vmatprep.subr.mxu0 0.0
    %1029 = vmatpush2.msra.mxu0 0.0
    %1030 = vmatprep.subr.mxu0 0.0
    %1031 = vmatpush2.msra.mxu0 0.0
    %1032 = vmatprep.subr.mxu0 0.0
    %1033 = vmatpush2.msra.mxu0 0.0
    %1034 = vmatprep.subr.mxu0 0.0
    %1035 = vmatpush2.msra.mxu0 0.0
    %1036 = vmatprep.subr.mxu0 0.0
    %1037 = vmatpush2.msra.mxu0 0.0
    %1038 = vmatprep.subr.mxu0 0.0
    %1039 = vmatpush2.msra.mxu0 0.0
    %1040 = vmatprep.subr.mxu0 0.0
    %1041 = vmatpush2.msra.mxu0 0.0
    %1042 = vmatprep.subr.mxu0 0.0
    %1043 = vmatpush2.msra.mxu0 0.0
    %1044 = vmatprep.subr.mxu0 0.0
    %1045 = vmatpush2.msra.mxu0 0.0
    %1046 = vmatprep.subr.mxu0 0.0
    %1047 = vmatpush2.msra.mxu0 0.0
    %1048 = vmatprep.subr.mxu0 0.0
    %1049 = vmatpush2.msra.mxu0 0.0
    %1050 = vmatprep.mubr.f32.mxu0 0.0
    %1051 = vmatmul.mubr.f32.gmra.mxu0 %v981
    %v1052 = vpop.f32.mrf.mxu0
    %v1053 = vadd.f32 0.0, %v1052
    %v1054 = vpop.f32.mrf.mxu0
    %1055 = vmatprep.mubr.f32.mxu0 0.0
    %1056 = vmatmul.mubr.f32.gmra.mxu0 %v984
    %v1057 = vpop.f32.mrf.mxu0
    %v1058 = vadd.f32 0.0, %v1057
    %v1059 = vpop.f32.mrf.mxu0
    %1060 = vdwg.mxu0
    %v1061 = vadd.f32 %v978, %v1053
    %v1062 = vadd.f32 %v979, %v1058
    %v1063 = vmul.f32 %v1061, %v331
    %v1064 = vmul.f32 %v1062, %v331
    %v1065 = vtanh.pop %v1063
    %v1066 = vtanh.pop %v1064
    %v1067 = vmul.f32 %v1065, 0.5
    %v1068 = vmul.f32 %v1066, 0.5
    %v1069 = vadd.f32 %v1067, 0.5
    %v1070 = vadd.f32 %v1068, 0.5
    %1073 = vrot.lane.b32.xlu0 %v972, 32
    %v1074 = vpop.permute.xlu0 %1073
    %1075 = vrot.lane.b32.xlu0 %v973, 32
    %v1076 = vpop.permute.xlu0 %1075
    %v1079 = vmul.f32 %v1069, %v1074
    %v1080 = vmul.f32 %v1070, %v1076
    %1083 = vrot.lane.b32.xlu0 %v1065, 32
    %v1084 = vpop.permute.xlu0 %1083
    %1085 = vrot.lane.b32.xlu0 %v1066, 32
    %v1086 = vpop.permute.xlu0 %1085
    %v1089 = vmul.f32 %v1069, %v1084
    %v1090 = vmul.f32 %v1070, %v1086
    %1093 = vrot.lane.b32.xlu0 %v1089, 32
    %v1094 = vpop.permute.xlu0 %1093
    %1095 = vrot.lane.b32.xlu0 %v1090, 32
    %v1096 = vpop.permute.xlu0 %1095
    %v1099 = vadd.f32 %v1079, %v1094
    %v1100 = vadd.f32 %v1080, %v1096
    %v1101 = vtanh.pop %v1099
    %v1102 = vtanh.pop %v1100
    %1105 = vrot.lane.b32.xlu0 %v1101, 32
    %v1106 = vpop.permute.xlu0 %1105
    %1107 = vrot.lane.b32.xlu0 %v1102, 32
    %v1108 = vpop.permute.xlu0 %1107
    %v1111 = vmul.f32 %v1069, %v1106
    %v1112 = vmul.f32 %v1070, %v1108
    %v1113 = vsel %vm316, 4, 3
    %vm1114 = vcmp.gt.s32.totalorder %v462, %v1113
    %vm1115 = vcmp.gt.s32.totalorder %v465, %v1113
    %1118 = vrot.lane.b32.xlu0 %v1111, 64
    %v1119 = vpop.permute.xlu0 %1118
    %1120 = vrot.lane.b32.xlu0 %v1112, 64
    %v1121 = vpop.permute.xlu0 %1120
    %v1124 = vsel %vm1114, %v1119, %v962
    %v1125 = vsel %vm1115, %v1121, %v963
    %1128 = vrot.lane.b32.xlu0 %v1099, 96
    %v1129 = vpop.permute.xlu0 %1128
    %1130 = vrot.lane.b32.xlu0 %v1100, 96
    %v1131 = vpop.permute.xlu0 %1130
    %v1134 = vsel %vm1114, %v1129, %v972
    %v1135 = vsel %vm1115, %v1131, %v973
    %v1136 = vsel %vm1114, %v1119, -inf
    %v1137 = vsel %vm1115, %v1121, -inf
    %v1138 = vmax.f32 %v976, %v1136
    %v1139 = vmax.f32 %v977, %v1137
    %v1140 = vsel %vm333, %v285, %v255
    %v1141 = vsel %vm333, %v290, %v260
    %v1143 = vsel %vm336, %v1124, 0
    %v1146 = vsel %vm336, %v1125, 0
    %1148 = vmatprep.subr.mxu0 0.0
    %1149 = vmatpush1.msra.mxu0 0.0
    %1150 = vmatprep.subr.mxu0 0.0
    %1151 = vmatpush1.msra.mxu0 0.0
    %1152 = vmatprep.subr.mxu0 0.0
    %1153 = vmatpush1.msra.mxu0 0.0
    %1154 = vmatprep.subr.mxu0 0.0
    %1155 = vmatpush1.msra.mxu0 0.0
    %1156 = vmatprep.subr.mxu0 0.0
    %1157 = vmatpush1.msra.mxu0 0.0
    %1158 = vmatprep.subr.mxu0 0.0
    %1159 = vmatpush1.msra.mxu0 0.0
    %1160 = vmatprep.subr.mxu0 0.0
    %1161 = vmatpush1.msra.mxu0 0.0
    %1162 = vmatprep.subr.mxu0 0.0
    %1163 = vmatpush1.msra.mxu0 0.0
    %1164 = vmatprep.subr.mxu0 0.0
    %1165 = vmatpush1.msra.mxu0 0.0
    %1166 = vmatprep.subr.mxu0 0.0
    %1167 = vmatpush1.msra.mxu0 0.0
    %1168 = vmatprep.subr.mxu0 0.0
    %1169 = vmatpush1.msra.mxu0 0.0
    %1170 = vmatprep.subr.mxu0 0.0
    %1171 = vmatpush1.msra.mxu0 0.0
    %1172 = vmatprep.subr.mxu0 0.0
    %1173 = vmatpush1.msra.mxu0 %v95
    %1174 = vmatprep.subr.mxu0 0.0
    %1175 = vmatpush1.msra.mxu0 %v94
    %1176 = vmatprep.subr.mxu0 0.0
    %1177 = vmatpush1.msra.mxu0 %v93
    %1178 = vmatprep.subr.mxu0 0.0
    %1179 = vmatpush1.msra.mxu0 %v92
    %1180 = vmatprep.subr.mxu0 0.0
    %1181 = vmatpush2.msra.mxu0 0.0
    %1182 = vmatprep.subr.mxu0 0.0
    %1183 = vmatpush2.msra.mxu0 0.0
    %1184 = vmatprep.subr.mxu0 0.0
    %1185 = vmatpush2.msra.mxu0 0.0
    %1186 = vmatprep.subr.mxu0 0.0
    %1187 = vmatpush2.msra.mxu0 0.0
    %1188 = vmatprep.subr.mxu0 0.0
    %1189 = vmatpush2.msra.mxu0 0.0
    %1190 = vmatprep.subr.mxu0 0.0
    %1191 = vmatpush2.msra.mxu0 0.0
    %1192 = vmatprep.subr.mxu0 0.0
    %1193 = vmatpush2.msra.mxu0 0.0
    %1194 = vmatprep.subr.mxu0 0.0
    %1195 = vmatpush2.msra.mxu0 0.0
    %1196 = vmatprep.subr.mxu0 0.0
    %1197 = vmatpush2.msra.mxu0 0.0
    %1198 = vmatprep.subr.mxu0 0.0
    %1199 = vmatpush2.msra.mxu0 0.0
    %1200 = vmatprep.subr.mxu0 0.0
    %1201 = vmatpush2.msra.mxu0 0.0
    %1202 = vmatprep.subr.mxu0 0.0
    %1203 = vmatpush2.msra.mxu0 0.0
    %1204 = vmatprep.subr.mxu0 0.0
    %1205 = vmatpush2.msra.mxu0 0.0
    %1206 = vmatprep.subr.mxu0 0.0
    %1207 = vmatpush2.msra.mxu0 0.0
    %1208 = vmatprep.subr.mxu0 0.0
    %1209 = vmatpush2.msra.mxu0 0.0
    %1210 = vmatprep.subr.mxu0 0.0
    %1211 = vmatpush2.msra.mxu0 0.0
    %1212 = vmatprep.mubr.f32.mxu0 0.0
    %1213 = vmatmul.mubr.f32.gmra.mxu0 %v1143
    %v1214 = vpop.f32.mrf.mxu0
    %v1215 = vadd.f32 0.0, %v1214
    %v1216 = vpop.f32.mrf.mxu0
    %1217 = vmatprep.mubr.f32.mxu0 0.0
    %1218 = vmatmul.mubr.f32.gmra.mxu0 %v1146
    %v1219 = vpop.f32.mrf.mxu0
    %v1220 = vadd.f32 0.0, %v1219
    %v1221 = vpop.f32.mrf.mxu0
    %1222 = vdwg.mxu0
    %v1223 = vadd.f32 %v1140, %v1215
    %v1224 = vadd.f32 %v1141, %v1220
    %v1225 = vmul.f32 %v1223, %v331
    %v1226 = vmul.f32 %v1224, %v331
    %v1227 = vtanh.pop %v1225
    %v1228 = vtanh.pop %v1226
    %v1229 = vmul.f32 %v1227, 0.5
    %v1230 = vmul.f32 %v1228, 0.5
    %v1231 = vadd.f32 %v1229, 0.5
    %v1232 = vadd.f32 %v1230, 0.5
    %1235 = vrot.lane.b32.xlu0 %v1134, 32
    %v1236 = vpop.permute.xlu0 %1235
    %1237 = vrot.lane.b32.xlu0 %v1135, 32
    %v1238 = vpop.permute.xlu0 %1237
    %v1241 = vmul.f32 %v1231, %v1236
    %v1242 = vmul.f32 %v1232, %v1238
    %1245 = vrot.lane.b32.xlu0 %v1227, 32
    %v1246 = vpop.permute.xlu0 %1245
    %1247 = vrot.lane.b32.xlu0 %v1228, 32
    %v1248 = vpop.permute.xlu0 %1247
    %v1251 = vmul.f32 %v1231, %v1246
    %v1252 = vmul.f32 %v1232, %v1248
    %1255 = vrot.lane.b32.xlu0 %v1251, 32
    %v1256 = vpop.permute.xlu0 %1255
    %1257 = vrot.lane.b32.xlu0 %v1252, 32
    %v1258 = vpop.permute.xlu0 %1257
    %v1261 = vadd.f32 %v1241, %v1256
    %v1262 = vadd.f32 %v1242, %v1258
    %v1263 = vtanh.pop %v1261
    %v1264 = vtanh.pop %v1262
    %1267 = vrot.lane.b32.xlu0 %v1263, 32
    %v1268 = vpop.permute.xlu0 %1267
    %1269 = vrot.lane.b32.xlu0 %v1264, 32
    %v1270 = vpop.permute.xlu0 %1269
    %v1273 = vmul.f32 %v1231, %v1268
    %v1274 = vmul.f32 %v1232, %v1270
    %v1275 = vsel %vm316, 5, 2
    %vm1276 = vcmp.gt.s32.totalorder %v462, %v1275
    %vm1277 = vcmp.gt.s32.totalorder %v465, %v1275
    %1280 = vrot.lane.b32.xlu0 %v1273, 64
    %v1281 = vpop.permute.xlu0 %1280
    %1282 = vrot.lane.b32.xlu0 %v1274, 64
    %v1283 = vpop.permute.xlu0 %1282
    %v1286 = vsel %vm1276, %v1281, %v1124
    %v1287 = vsel %vm1277, %v1283, %v1125
    %1290 = vrot.lane.b32.xlu0 %v1261, 96
    %v1291 = vpop.permute.xlu0 %1290
    %1292 = vrot.lane.b32.xlu0 %v1262, 96
    %v1293 = vpop.permute.xlu0 %1292
    %v1296 = vsel %vm1276, %v1291, %v1134
    %v1297 = vsel %vm1277, %v1293, %v1135
    %v1298 = vsel %vm1276, %v1281, -inf
    %v1299 = vsel %vm1277, %v1283, -inf
    %v1300 = vmax.f32 %v1138, %v1298
    %v1301 = vmax.f32 %v1139, %v1299
    %v1302 = vsel %vm333, %v295, %v245
    %v1303 = vsel %vm333, %v300, %v250
    %v1305 = vsel %vm336, %v1286, 0
    %v1308 = vsel %vm336, %v1287, 0
    %1310 = vmatprep.subr.mxu0 0.0
    %1311 = vmatpush1.msra.mxu0 0.0
    %1312 = vmatprep.subr.mxu0 0.0
    %1313 = vmatpush1.msra.mxu0 0.0
    %1314 = vmatprep.subr.mxu0 0.0
    %1315 = vmatpush1.msra.mxu0 0.0
    %1316 = vmatprep.subr.mxu0 0.0
    %1317 = vmatpush1.msra.mxu0 0.0
    %1318 = vmatprep.subr.mxu0 0.0
    %1319 = vmatpush1.msra.mxu0 0.0
    %1320 = vmatprep.subr.mxu0 0.0
    %1321 = vmatpush1.msra.mxu0 0.0
    %1322 = vmatprep.subr.mxu0 0.0
    %1323 = vmatpush1.msra.mxu0 0.0
    %1324 = vmatprep.subr.mxu0 0.0
    %1325 = vmatpush1.msra.mxu0 0.0
    %1326 = vmatprep.subr.mxu0 0.0
    %1327 = vmatpush1.msra.mxu0 0.0
    %1328 = vmatprep.subr.mxu0 0.0
    %1329 = vmatpush1.msra.mxu0 0.0
    %1330 = vmatprep.subr.mxu0 0.0
    %1331 = vmatpush1.msra.mxu0 0.0
    %1332 = vmatprep.subr.mxu0 0.0
    %1333 = vmatpush1.msra.mxu0 0.0
    %1334 = vmatprep.subr.mxu0 0.0
    %1335 = vmatpush1.msra.mxu0 %v95
    %1336 = vmatprep.subr.mxu0 0.0
    %1337 = vmatpush1.msra.mxu0 %v94
    %1338 = vmatprep.subr.mxu0 0.0
    %1339 = vmatpush1.msra.mxu0 %v93
    %1340 = vmatprep.subr.mxu0 0.0
    %1341 = vmatpush1.msra.mxu0 %v92
    %1342 = vmatprep.subr.mxu0 0.0
    %1343 = vmatpush2.msra.mxu0 0.0
    %1344 = vmatprep.subr.mxu0 0.0
    %1345 = vmatpush2.msra.mxu0 0.0
    %1346 = vmatprep.subr.mxu0 0.0
    %1347 = vmatpush2.msra.mxu0 0.0
    %1348 = vmatprep.subr.mxu0 0.0
    %1349 = vmatpush2.msra.mxu0 0.0
    %1350 = vmatprep.subr.mxu0 0.0
    %1351 = vmatpush2.msra.mxu0 0.0
    %1352 = vmatprep.subr.mxu0 0.0
    %1353 = vmatpush2.msra.mxu0 0.0
    %1354 = vmatprep.subr.mxu0 0.0
    %1355 = vmatpush2.msra.mxu0 0.0
    %1356 = vmatprep.subr.mxu0 0.0
    %1357 = vmatpush2.msra.mxu0 0.0
    %1358 = vmatprep.subr.mxu0 0.0
    %1359 = vmatpush2.msra.mxu0 0.0
    %1360 = vmatprep.subr.mxu0 0.0
    %1361 = vmatpush2.msra.mxu0 0.0
    %1362 = vmatprep.subr.mxu0 0.0
    %1363 = vmatpush2.msra.mxu0 0.0
    %1364 = vmatprep.subr.mxu0 0.0
    %1365 = vmatpush2.msra.mxu0 0.0
    %1366 = vmatprep.subr.mxu0 0.0
    %1367 = vmatpush2.msra.mxu0 0.0
    %1368 = vmatprep.subr.mxu0 0.0
    %1369 = vmatpush2.msra.mxu0 0.0
    %1370 = vmatprep.subr.mxu0 0.0
    %1371 = vmatpush2.msra.mxu0 0.0
    %1372 = vmatprep.subr.mxu0 0.0
    %1373 = vmatpush2.msra.mxu0 0.0
    %1374 = vmatprep.mubr.f32.mxu0 0.0
    %1375 = vmatmul.mubr.f32.gmra.mxu0 %v1305
    %v1376 = vpop.f32.mrf.mxu0
    %v1377 = vadd.f32 0.0, %v1376
    %v1378 = vpop.f32.mrf.mxu0
    %1379 = vmatprep.mubr.f32.mxu0 0.0
    %1380 = vmatmul.mubr.f32.gmra.mxu0 %v1308
    %v1381 = vpop.f32.mrf.mxu0
    %v1382 = vadd.f32 0.0, %v1381
    %v1383 = vpop.f32.mrf.mxu0
    %1384 = vdwg.mxu0
    %v1385 = vadd.f32 %v1302, %v1377
    %v1386 = vadd.f32 %v1303, %v1382
    %v1387 = vmul.f32 %v1385, %v331
    %v1388 = vmul.f32 %v1386, %v331
    %v1389 = vtanh.pop %v1387
    %v1390 = vtanh.pop %v1388
    %v1391 = vmul.f32 %v1389, 0.5
    %v1392 = vmul.f32 %v1390, 0.5
    %v1393 = vadd.f32 %v1391, 0.5
    %v1394 = vadd.f32 %v1392, 0.5
    %1397 = vrot.lane.b32.xlu0 %v1296, 32
    %v1398 = vpop.permute.xlu0 %1397
    %1399 = vrot.lane.b32.xlu0 %v1297, 32
    %v1400 = vpop.permute.xlu0 %1399
    %v1403 = vmul.f32 %v1393, %v1398
    %v1404 = vmul.f32 %v1394, %v1400
    %1407 = vrot.lane.b32.xlu0 %v1389, 32
    %v1408 = vpop.permute.xlu0 %1407
    %1409 = vrot.lane.b32.xlu0 %v1390, 32
    %v1410 = vpop.permute.xlu0 %1409
    %v1413 = vmul.f32 %v1393, %v1408
    %v1414 = vmul.f32 %v1394, %v1410
    %1417 = vrot.lane.b32.xlu0 %v1413, 32
    %v1418 = vpop.permute.xlu0 %1417
    %1419 = vrot.lane.b32.xlu0 %v1414, 32
    %v1420 = vpop.permute.xlu0 %1419
    %v1423 = vadd.f32 %v1403, %v1418
    %v1424 = vadd.f32 %v1404, %v1420
    %v1425 = vtanh.pop %v1423
    %v1426 = vtanh.pop %v1424
    %1429 = vrot.lane.b32.xlu0 %v1425, 32
    %v1430 = vpop.permute.xlu0 %1429
    %1431 = vrot.lane.b32.xlu0 %v1426, 32
    %v1432 = vpop.permute.xlu0 %1431
    %v1435 = vmul.f32 %v1393, %v1430
    %v1436 = vmul.f32 %v1394, %v1432
    %v1437 = vsel %vm316, 6, 1
    %vm1438 = vcmp.gt.s32.totalorder %v462, %v1437
    %vm1439 = vcmp.gt.s32.totalorder %v465, %v1437
    %1442 = vrot.lane.b32.xlu0 %v1435, 64
    %v1443 = vpop.permute.xlu0 %1442
    %1444 = vrot.lane.b32.xlu0 %v1436, 64
    %v1445 = vpop.permute.xlu0 %1444
    %v1448 = vsel %vm1438, %v1443, %v1286
    %v1449 = vsel %vm1439, %v1445, %v1287
    %1452 = vrot.lane.b32.xlu0 %v1423, 96
    %v1453 = vpop.permute.xlu0 %1452
    %1454 = vrot.lane.b32.xlu0 %v1424, 96
    %v1455 = vpop.permute.xlu0 %1454
    %v1458 = vsel %vm1438, %v1453, %v1296
    %v1459 = vsel %vm1439, %v1455, %v1297
    %v1460 = vsel %vm1438, %v1443, -inf
    %v1461 = vsel %vm1439, %v1445, -inf
    %v1462 = vmax.f32 %v1300, %v1460
    %v1463 = vmax.f32 %v1301, %v1461
    %v1464 = vsel %vm333, %v305, %v235
    %v1465 = vsel %vm333, %v310, %v240
    %v1467 = vsel %vm336, %v1448, 0
    %v1470 = vsel %vm336, %v1449, 0
    %1472 = vmatprep.subr.mxu0 0.0
    %1473 = vmatpush1.msra.mxu0 0.0
    %1474 = vmatprep.subr.mxu0 0.0
    %1475 = vmatpush1.msra.mxu0 0.0
    %1476 = vmatprep.subr.mxu0 0.0
    %1477 = vmatpush1.msra.mxu0 0.0
    %1478 = vmatprep.subr.mxu0 0.0
    %1479 = vmatpush1.msra.mxu0 0.0
    %1480 = vmatprep.subr.mxu0 0.0
    %1481 = vmatpush1.msra.mxu0 0.0
    %1482 = vmatprep.subr.mxu0 0.0
    %1483 = vmatpush1.msra.mxu0 0.0
    %1484 = vmatprep.subr.mxu0 0.0
    %1485 = vmatpush1.msra.mxu0 0.0
    %1486 = vmatprep.subr.mxu0 0.0
    %1487 = vmatpush1.msra.mxu0 0.0
    %1488 = vmatprep.subr.mxu0 0.0
    %1489 = vmatpush1.msra.mxu0 0.0
    %1490 = vmatprep.subr.mxu0 0.0
    %1491 = vmatpush1.msra.mxu0 0.0
    %1492 = vmatprep.subr.mxu0 0.0
    %1493 = vmatpush1.msra.mxu0 0.0
    %1494 = vmatprep.subr.mxu0 0.0
    %1495 = vmatpush1.msra.mxu0 0.0
    %1496 = vmatprep.subr.mxu0 0.0
    %1497 = vmatpush1.msra.mxu0 %v95
    %1498 = vmatprep.subr.mxu0 0.0
    %1499 = vmatpush1.msra.mxu0 %v94
    %1500 = vmatprep.subr.mxu0 0.0
    %1501 = vmatpush1.msra.mxu0 %v93
    %1502 = vmatprep.subr.mxu0 0.0
    %1503 = vmatpush1.msra.mxu0 %v92
    %1504 = vmatprep.subr.mxu0 0.0
    %1505 = vmatpush2.msra.mxu0 0.0
    %1506 = vmatprep.subr.mxu0 0.0
    %1507 = vmatpush2.msra.mxu0 0.0
    %1508 = vmatprep.subr.mxu0 0.0
    %1509 = vmatpush2.msra.mxu0 0.0
    %1510 = vmatprep.subr.mxu0 0.0
    %1511 = vmatpush2.msra.mxu0 0.0
    %1512 = vmatprep.subr.mxu0 0.0
    %1513 = vmatpush2.msra.mxu0 0.0
    %1514 = vmatprep.subr.mxu0 0.0
    %1515 = vmatpush2.msra.mxu0 0.0
    %1516 = vmatprep.subr.mxu0 0.0
    %1517 = vmatpush2.msra.mxu0 0.0
    %1518 = vmatprep.subr.mxu0 0.0
    %1519 = vmatpush2.msra.mxu0 0.0
    %1520 = vmatprep.subr.mxu0 0.0
    %1521 = vmatpush2.msra.mxu0 0.0
    %1522 = vmatprep.subr.mxu0 0.0
    %1523 = vmatpush2.msra.mxu0 0.0
    %1524 = vmatprep.subr.mxu0 0.0
    %1525 = vmatpush2.msra.mxu0 0.0
    %1526 = vmatprep.subr.mxu0 0.0
    %1527 = vmatpush2.msra.mxu0 0.0
    %1528 = vmatprep.subr.mxu0 0.0
    %1529 = vmatpush2.msra.mxu0 0.0
    %1530 = vmatprep.subr.mxu0 0.0
    %1531 = vmatpush2.msra.mxu0 0.0
    %1532 = vmatprep.subr.mxu0 0.0
    %1533 = vmatpush2.msra.mxu0 0.0
    %1534 = vmatprep.subr.mxu0 0.0
    %1535 = vmatpush2.msra.mxu0 0.0
    %1536 = vmatprep.mubr.f32.mxu0 0.0
    %1537 = vmatmul.mubr.f32.gmra.mxu0 %v1467
    %v1538 = vpop.f32.mrf.mxu0
    %v1539 = vadd.f32 0.0, %v1538
    %v1540 = vpop.f32.mrf.mxu0
    %1541 = vmatprep.mubr.f32.mxu0 0.0
    %1542 = vmatmul.mubr.f32.gmra.mxu0 %v1470
    %v1543 = vpop.f32.mrf.mxu0
    %v1544 = vadd.f32 0.0, %v1543
    %v1545 = vpop.f32.mrf.mxu0
    %1546 = vdwg.mxu0
    %v1547 = vadd.f32 %v1464, %v1539
    %v1548 = vadd.f32 %v1465, %v1544
    %v1549 = vmul.f32 %v1547, %v331
    %v1550 = vmul.f32 %v1548, %v331
    %v1551 = vtanh.pop %v1549
    %v1552 = vtanh.pop %v1550
    %v1553 = vmul.f32 %v1551, 0.5
    %v1554 = vmul.f32 %v1552, 0.5
    %v1555 = vadd.f32 %v1553, 0.5
    %v1556 = vadd.f32 %v1554, 0.5
    %1559 = vrot.lane.b32.xlu0 %v1458, 32
    %v1560 = vpop.permute.xlu0 %1559
    %1561 = vrot.lane.b32.xlu0 %v1459, 32
    %v1562 = vpop.permute.xlu0 %1561
    %v1565 = vmul.f32 %v1555, %v1560
    %v1566 = vmul.f32 %v1556, %v1562
    %1569 = vrot.lane.b32.xlu0 %v1551, 32
    %v1570 = vpop.permute.xlu0 %1569
    %1571 = vrot.lane.b32.xlu0 %v1552, 32
    %v1572 = vpop.permute.xlu0 %1571
    %v1575 = vmul.f32 %v1555, %v1570
    %v1576 = vmul.f32 %v1556, %v1572
    %1579 = vrot.lane.b32.xlu0 %v1575, 32
    %v1580 = vpop.permute.xlu0 %1579
    %1581 = vrot.lane.b32.xlu0 %v1576, 32
    %v1582 = vpop.permute.xlu0 %1581
    %v1585 = vadd.f32 %v1565, %v1580
    %v1586 = vadd.f32 %v1566, %v1582
    %v1587 = vtanh.pop %v1585
    %v1588 = vtanh.pop %v1586
    %1591 = vrot.lane.b32.xlu0 %v1587, 32
    %v1592 = vpop.permute.xlu0 %1591
    %1593 = vrot.lane.b32.xlu0 %v1588, 32
    %v1594 = vpop.permute.xlu0 %1593
    %v1597 = vmul.f32 %v1555, %v1592
    %v1598 = vmul.f32 %v1556, %v1594
    %v1599 = vsel %vm316, 7, 0
    %vm1600 = vcmp.gt.s32.totalorder %v462, %v1599
    %vm1601 = vcmp.gt.s32.totalorder %v465, %v1599
    %1604 = vrot.lane.b32.xlu0 %v1597, 64
    %v1605 = vpop.permute.xlu0 %1604
    %1606 = vrot.lane.b32.xlu0 %v1598, 64
    %v1607 = vpop.permute.xlu0 %1606
    %v1610 = vsel %vm1600, %v1605, -inf
    %v1611 = vsel %vm1601, %v1607, -inf
    %v1612 = vmax.f32 %v1462, %v1610
    %v1613 = vmax.f32 %v1463, %v1611
    %v1614 = vld [vmem:[#allocation7] sm:$0xff]
    %v1615 = vld [vmem:[#allocation7 + $0x8] sm:$0xff]
    %v1616 = vld [vmem:[#allocation7 + $0x10] sm:$0xff]
    %v1617 = vld [vmem:[#allocation7 + $0x18] sm:$0xff]
    %v1618 = vld [vmem:[%s6] sm:$0x1]
    %v1620 = vlaneseq
    %v1621 = vshrl.u32 %v1620, 7
    %v1622 = vsub.s32 0, %v1621
    %v1623 = vrot.slane %v1618, %v1622
    %v1626 = vsel %vm336, %v1612, 0
    %v1629 = vsel %vm336, %v1613, 0
    %1631 = vmatprep.subr.mxu0 0.0
    %1632 = vmatpush1.msra.mxu0 0.0
    %1633 = vmatprep.subr.mxu0 0.0
    %1634 = vmatpush1.msra.mxu0 0.0
    %1635 = vmatprep.subr.mxu0 0.0
    %1636 = vmatpush1.msra.mxu0 0.0
    %1637 = vmatprep.subr.mxu0 0.0
    %1638 = vmatpush1.msra.mxu0 0.0
    %1639 = vmatprep.subr.mxu0 0.0
    %1640 = vmatpush1.msra.mxu0 0.0
    %1641 = vmatprep.subr.mxu0 0.0
    %1642 = vmatpush1.msra.mxu0 0.0
    %1643 = vmatprep.subr.mxu0 0.0
    %1644 = vmatpush1.msra.mxu0 0.0
    %1645 = vmatprep.subr.mxu0 0.0
    %1646 = vmatpush1.msra.mxu0 0.0
    %1647 = vmatprep.subr.mxu0 0.0
    %1648 = vmatpush1.msra.mxu0 0.0
    %1649 = vmatprep.subr.mxu0 0.0
    %1650 = vmatpush1.msra.mxu0 0.0
    %1651 = vmatprep.subr.mxu0 0.0
    %1652 = vmatpush1.msra.mxu0 0.0
    %1653 = vmatprep.subr.mxu0 0.0
    %1654 = vmatpush1.msra.mxu0 0.0
    %1655 = vmatprep.subr.mxu0 0.0
    %1656 = vmatpush1.msra.mxu0 %v1617
    %1657 = vmatprep.subr.mxu0 0.0
    %1658 = vmatpush1.msra.mxu0 %v1616
    %1659 = vmatprep.subr.mxu0 0.0
    %1660 = vmatpush1.msra.mxu0 %v1615
    %1661 = vmatprep.subr.mxu0 0.0
    %1662 = vmatpush1.msra.mxu0 %v1614
    %1663 = vmatprep.subr.mxu0 0.0
    %1664 = vmatpush2.msra.mxu0 0.0
    %1665 = vmatprep.subr.mxu0 0.0
    %1666 = vmatpush2.msra.mxu0 0.0
    %1667 = vmatprep.subr.mxu0 0.0
    %1668 = vmatpush2.msra.mxu0 0.0
    %1669 = vmatprep.subr.mxu0 0.0
    %1670 = vmatpush2.msra.mxu0 0.0
    %1671 = vmatprep.subr.mxu0 0.0
    %1672 = vmatpush2.msra.mxu0 0.0
    %1673 = vmatprep.subr.mxu0 0.0
    %1674 = vmatpush2.msra.mxu0 0.0
    %1675 = vmatprep.subr.mxu0 0.0
    %1676 = vmatpush2.msra.mxu0 0.0
    %1677 = vmatprep.subr.mxu0 0.0
    %1678 = vmatpush2.msra.mxu0 0.0
    %1679 = vmatprep.subr.mxu0 0.0
    %1680 = vmatpush2.msra.mxu0 0.0
    %1681 = vmatprep.subr.mxu0 0.0
    %1682 = vmatpush2.msra.mxu0 0.0
    %1683 = vmatprep.subr.mxu0 0.0
    %1684 = vmatpush2.msra.mxu0 0.0
    %1685 = vmatprep.subr.mxu0 0.0
    %1686 = vmatpush2.msra.mxu0 0.0
    %1687 = vmatprep.subr.mxu0 0.0
    %1688 = vmatpush2.msra.mxu0 0.0
    %1689 = vmatprep.subr.mxu0 0.0
    %1690 = vmatpush2.msra.mxu0 0.0
    %1691 = vmatprep.subr.mxu0 0.0
    %1692 = vmatpush2.msra.mxu0 0.0
    %1693 = vmatprep.subr.mxu0 0.0
    %1694 = vmatpush2.msra.mxu0 0.0
    %1695 = vmatprep.mubr.f32.mxu0 0.0
    %1696 = vmatmul.mubr.f32.gmra.mxu0 %v1626
    %v1697 = vpop.f32.mrf.mxu0
    %v1698 = vadd.f32 %v1623, %v1697
    %v1699 = vpop.f32.mrf.mxu0
    %1700 = vmatprep.mubr.f32.mxu0 0.0
    %1701 = vmatmul.mubr.f32.gmra.mxu0 %v1629
    %v1702 = vpop.f32.mrf.mxu0
    %v1703 = vadd.f32 %v1623, %v1702
    %v1704 = vpop.f32.mrf.mxu0
    %1705 = vdwg.mxu0
    %v1706 = vmax.f32 %v1698, 0.0
    %v1707 = vmax.f32 %v1703, 0.0
    %v1708 = vld [vmem:[#allocation8] sm:$0xff]
    %v1709 = vld [vmem:[#allocation8 + $0x8] sm:$0xff]
    %v1710 = vld [vmem:[#allocation8 + $0x10] sm:$0xff]
    %v1711 = vld [vmem:[#allocation8 + $0x18] sm:$0xff]
    %v1712 = vld [vmem:[#allocation8 + $0x20] sm:$0xff]
    %v1713 = vld [vmem:[#allocation8 + $0x28] sm:$0xff]
    %v1714 = vld [vmem:[#allocation8 + $0x30] sm:$0xff]
    %v1715 = vld [vmem:[#allocation8 + $0x38] sm:$0xff]
    %v1716 = vld [vmem:[#allocation8 + $0x40] sm:$0xff]
    %v1717 = vld [vmem:[#allocation8 + $0x48] sm:$0xff]
    %v1718 = vld [vmem:[#allocation8 + $0x50] sm:$0xff]
    %v1719 = vld [vmem:[#allocation8 + $0x58] sm:$0xff]
    %v1720 = vld [vmem:[#allocation8 + $0x60] sm:$0xff]
    %v1721 = vld [vmem:[#allocation8 + $0x68] sm:$0xff]
    %v1722 = vld [vmem:[#allocation8 + $0x70] sm:$0xff]
    %v1723 = vld [vmem:[#allocation8 + $0x78] sm:$0xff]
    %v1724 = vld [vmem:[%s8] sm:$0x1]
    %v1726 = vlaneseq
    %v1727 = vshrl.u32 %v1726, 7
    %v1728 = vsub.s32 0, %v1727
    %v1729 = vrot.slane %v1724, %v1728
    %1731 = vmatprep.subr.mxu0 0.0
    %1732 = vmatpush1.msra.mxu0 %v1723
    %1733 = vmatprep.subr.mxu0 0.0
    %1734 = vmatpush1.msra.mxu0 %v1722
    %1735 = vmatprep.subr.mxu0 0.0
    %1736 = vmatpush1.msra.mxu0 %v1721
    %1737 = vmatprep.subr.mxu0 0.0
    %1738 = vmatpush1.msra.mxu0 %v1720
    %1739 = vmatprep.subr.mxu0 0.0
    %1740 = vmatpush1.msra.mxu0 %v1719
    %1741 = vmatprep.subr.mxu0 0.0
    %1742 = vmatpush1.msra.mxu0 %v1718
    %1743 = vmatprep.subr.mxu0 0.0
    %1744 = vmatpush1.msra.mxu0 %v1717
    %1745 = vmatprep.subr.mxu0 0.0
    %1746 = vmatpush1.msra.mxu0 %v1716
    %1747 = vmatprep.subr.mxu0 0.0
    %1748 = vmatpush1.msra.mxu0 %v1715
    %1749 = vmatprep.subr.mxu0 0.0
    %1750 = vmatpush1.msra.mxu0 %v1714
    %1751 = vmatprep.subr.mxu0 0.0
    %1752 = vmatpush1.msra.mxu0 %v1713
    %1753 = vmatprep.subr.mxu0 0.0
    %1754 = vmatpush1.msra.mxu0 %v1712
    %1755 = vmatprep.subr.mxu0 0.0
    %1756 = vmatpush1.msra.mxu0 %v1711
    %1757 = vmatprep.subr.mxu0 0.0
    %1758 = vmatpush1.msra.mxu0 %v1710
    %1759 = vmatprep.subr.mxu0 0.0
    %1760 = vmatpush1.msra.mxu0 %v1709
    %1761 = vmatprep.subr.mxu0 0.0
    %1762 = vmatpush1.msra.mxu0 %v1708
    %1763 = vmatprep.subr.mxu0 0.0
    %1764 = vmatpush2.msra.mxu0 0.0
    %1765 = vmatprep.subr.mxu0 0.0
    %1766 = vmatpush2.msra.mxu0 0.0
    %1767 = vmatprep.subr.mxu0 0.0
    %1768 = vmatpush2.msra.mxu0 0.0
    %1769 = vmatprep.subr.mxu0 0.0
    %1770 = vmatpush2.msra.mxu0 0.0
    %1771 = vmatprep.subr.mxu0 0.0
    %1772 = vmatpush2.msra.mxu0 0.0
    %1773 = vmatprep.subr.mxu0 0.0
    %1774 = vmatpush2.msra.mxu0 0.0
    %1775 = vmatprep.subr.mxu0 0.0
    %1776 = vmatpush2.msra.mxu0 0.0
    %1777 = vmatprep.subr.mxu0 0.0
    %1778 = vmatpush2.msra.mxu0 0.0
    %1779 = vmatprep.subr.mxu0 0.0
    %1780 = vmatpush2.msra.mxu0 0.0
    %1781 = vmatprep.subr.mxu0 0.0
    %1782 = vmatpush2.msra.mxu0 0.0
    %1783 = vmatprep.subr.mxu0 0.0
    %1784 = vmatpush2.msra.mxu0 0.0
    %1785 = vmatprep.subr.mxu0 0.0
    %1786 = vmatpush2.msra.mxu0 0.0
    %1787 = vmatprep.subr.mxu0 0.0
    %1788 = vmatpush2.msra.mxu0 0.0
    %1789 = vmatprep.subr.mxu0 0.0
    %1790 = vmatpush2.msra.mxu0 0.0
    %1791 = vmatprep.subr.mxu0 0.0
    %1792 = vmatpush2.msra.mxu0 0.0
    %1793 = vmatprep.subr.mxu0 0.0
    %1794 = vmatpush2.msra.mxu0 0.0
    %1795 = vmatprep.mubr.f32.mxu0 0.0
    %1796 = vmatmul.mubr.f32.gmra.mxu0 %v1706
    %v1797 = vpop.f32.mrf.mxu0
    %v1798 = vadd.f32 %v1729, %v1797
    %v1799 = vpop.f32.mrf.mxu0
    %1800 = vmatprep.mubr.f32.mxu0 0.0
    %1801 = vmatmul.mubr.f32.gmra.mxu0 %v1707
    %v1802 = vpop.f32.mrf.mxu0
    %v1803 = vadd.f32 %v1729, %v1802
    %v1804 = vpop.f32.mrf.mxu0
    %1805 = vdwg.mxu0
    %1806 = vst [vmem:[#allocation10] sm:$0xff] %v1798
    %1807 = vst [vmem:[#allocation10 + $0x8] sm:$0xff] %v1803
    // Predicated region
    $region54: #{tpu_custom_call.1} parent=1 // pred_check
      _
    $region55: #{tpu_custom_call.1} parent=1 // pred_check_branch
      %1809 = sbr.rel (0) target = $region57
    $region56: #{tpu_custom_call.1} parent=1 // pred_region
      %s1811 = ssub.s32 256, 256
      %1812 = vsyncadd [#allocation4], %s1811
      %s1813 = sshll.u32 [#allocation10], 4
      %s1814 = int_to_ptr.vmem [resolvable:$true] %s1813
      %1819 = dma.vmem_to_hbm [thread:$0]  %s1814, 256, %s9, [#allocation4], 128, 128, 8
    $region57: #{tpu_custom_call.1} parent=1 // pred_fallthru
      _
    // Predicated region
    $region58: #{tpu_custom_call.1} parent=1 // pred_check
      _
    $region59: #{tpu_custom_call.1} parent=1 // pred_check_branch
      %1821 = sbr.rel (0) target = $region61
    $region60: #{tpu_custom_call.1} parent=1 // pred_region
      %1822 = dma.done [#allocation4], 256
    $region61: #{tpu_custom_call.1} parent=1 // pred_fallthru
      _
    %1823 = vsyncpa [#allocation3], 1
    %1824 = vsyncpa [#allocation6], 1
    %1825 = vsyncpa [#allocation9], 1
    %1826 = vsyncpa [#allocation4], 1

</llo_original>
